<compile_context>
chip_gen: v7x
topology: tpu7x:2x2x1
jax: 0.10.0
libtpu: 0.0.40
codegen_flags: <defaults>
</compile_context>

<pallas_src>
import functools

import jax
import jax.numpy as jnp
from jax import lax
from jax.experimental import pallas as pl
from jax.experimental.pallas import tpu as pltpu


# ----------------------------------------------------------------------------
# Pallas kernel: one grid step = (batch b, query-row tile it).
# All pairwise intermediates are (TI, d_v, S): j (sequence) on lanes.
# ----------------------------------------------------------------------------
def _precision_attn_kernel(ptab_ref, qr_ref, qi_ref, jtab_ref, pcoef_ref, mexp_ref,
                           we_ref, be_ref, wp_ref, bp_ref,
                           eo_ref, qij_ref, xh_ref,
                           *, seq_len, tile_i, nu, delta, eta):
    S, TI = seq_len, tile_i
    f32 = jnp.float32
    i0 = pl.program_id(1) * TI                      # first global query row of this tile

    # i-side per-channel tables, already in lane-broadcast-ready layout (TI, Dv, 1)
    pr = ptab_ref[0]                                # Re exp(+lambda t_i)
    pim = ptab_ref[1]                               # Im exp(+lambda t_i)
    p2 = ptab_ref[2]                                # |exp(+lambda t_i)|^2
    qr = qr_ref[0]                                  # Re Q_i   (TI, Dk, 1)
    qi = qi_ref[0]                                  # Im Q_i

    # j-side per-channel tables, (Dv, S): S on lanes (resident per batch)
    nvr = jtab_ref[0, 0]                            # Re (N_j .* V_j)
    nvi = jtab_ref[0, 1]
    nkr = jtab_ref[0, 2]                            # Re (N_j .* K_j)
    nki = jtab_ref[0, 3]
    n2 = jtab_ref[0, 4]                             # |N_j|^2

    # causal mask / integer lag over (i, j) pairs -- (TI, 1, S), j on lanes
    ii = lax.broadcasted_iota(jnp.int32, (TI, 1, S), 0) + i0
    jj = lax.broadcasted_iota(jnp.int32, (TI, 1, S), 2)
    causal = ii >= jj
    lag = jnp.maximum(ii - jj, 0).astype(f32)

    # propagated estimates X_hat_ij = exp(lambda(t_i-t_j)) .* V_j = P_i .* (N_j .* V_j)
    xhr = jnp.where(causal, pr * nvr - pim * nvi, 0.0)          # (TI, Dv, S)
    xhi = jnp.where(causal, pr * nvi + pim * nvr, 0.0)

    # residuals R_ij = Q_i - P_i .* (N_j .* K_j)
    rr = qr - (pr * nkr - pim * nki)
    ri = qi - (pr * nki + pim * nkr)

    # TODO(synk): exact compute_precision formula unavailable; reconstructed from OU
    # covariance propagation, rewritten as P_ij = 1/(A + B*|exp|^2 + C*lag) per channel.
    e2 = p2 * n2
    var = pcoef_ref[0] + pcoef_ref[1] * e2 + pcoef_ref[2] * lag
    p = pl.reciprocal(var, approx=True)                          # EUP slot

    maha = p * (rr * rr + ri * ri)
    denom = 1.0 + nu * jnp.sum(maha, axis=1, keepdims=True)      # (TI, 1, S) channel sum
    a = jnp.where(causal, p * (1.0 / denom), 0.0)                # exact divide (small array)
    s = jnp.sum(a, axis=2, keepdims=True)                        # (TI, Dv, 1) lane reduce
    qij = a * (1.0 / s)                                          # rows sum to ~1 exactly

    estv_r = jnp.sum(qij * xhr, axis=2)                          # (TI, Dv)
    estv_i = jnp.sum(qij * xhi, axis=2)

    # ---- output projections: one small MXU pass each for W_e and W_p ----
    ev_cat = jnp.concatenate([estv_r, estv_i], axis=1)           # (TI, 2Dv)
    est_cat = jnp.dot(ev_cat, we_ref[...], preferred_element_type=f32) + be_ref[...]

    mer = mexp_ref[0]                                            # (1, Dv)
    mei = mexp_ref[1]
    pp_cat = jnp.concatenate([mer * estv_r - mei * estv_i,
                              mer * estv_i + mei * estv_r], axis=1)
    pred_cat = jnp.dot(pp_cat, wp_ref[...], preferred_element_type=f32) + bp_ref[...]
    out_cat = delta * pred_cat + eta * est_cat

    # ---- lane-dense single-slab stores ----
    eo_ref[0] = jnp.concatenate([est_cat, out_cat], axis=1)                  # (TI, 4H)
    qij_ref[0] = qij.astype(qij_ref.dtype)                                   # (TI, Dv, S)
    xh_ref[0] = jnp.concatenate([xhr, xhi], axis=1).astype(xh_ref.dtype)     # (TI, 2Dv, S)


# ----------------------------------------------------------------------------
# Parameter construction (reconstructed helpers).
# ----------------------------------------------------------------------------
def init_complex_matrix(key, m, n):
    kr, ki_ = jax.random.split(key)
    scale = 1.0 / float(jnp.sqrt(jnp.float32(n)))
    real = jax.random.uniform(kr, (m, n), jnp.float32, -scale, scale)
    imag = jax.random.uniform(ki_, (m, n), jnp.float32, -scale, scale)
    return jnp.stack([real, imag])


def compute_lambda_h(lambda1):
    # TODO(synk): exact compute_lambda_h source unavailable; conjugate-pair
    # construction from (2, d_v/2, 1) -> (2, d_v, 1).
    lam_r = lambda1[0, :, 0]
    lam_i = lambda1[1, :, 0]
    real = jnp.concatenate([lam_r, lam_r])
    imag = jnp.concatenate([lam_i, -lam_i])
    return jnp.stack([real, imag])[..., None]


def init_params(key, head_dim, d_v, d_k):
    keys = jax.random.split(key, 17)
    sqrt_dv = jnp.sqrt(jnp.float32(d_v))
    return {
        "lambda1": jnp.stack([jax.random.normal(keys[0], (d_v // 2,)),
                              jax.random.normal(keys[1], (d_v // 2,))])[..., None],
        "lambda_Omega_sqrt": jax.random.normal(keys[2], (1, d_v, 1)) / sqrt_dv,
        "lambda_Omega0_sqrt": jax.random.normal(keys[3], (1, d_v, 1)) / sqrt_dv,
        "lambda_Gamma_sqrt": jax.random.normal(keys[4], (1, d_v, 1)) / sqrt_dv,
        "W_q": init_complex_matrix(keys[5], d_k, head_dim),
        "W_k": init_complex_matrix(keys[6], d_k, head_dim),
        "W_v": init_complex_matrix(keys[7], d_v, head_dim),
        "W_p": init_complex_matrix(keys[8], head_dim, d_v),
        "W_r": init_complex_matrix(keys[9], d_v, head_dim),    # unused in forward
        "W_e": init_complex_matrix(keys[10], head_dim, d_v),
        "W_q_b": init_complex_matrix(keys[11], d_k, 1)[None],
        "W_k_b": init_complex_matrix(keys[12], d_k, 1)[None],
        "W_v_b": init_complex_matrix(keys[13], d_v, 1)[None],
        "W_p_b": init_complex_matrix(keys[14], head_dim, 1)[None],
        "W_r_b": init_complex_matrix(keys[15], d_v, 1)[None],  # unused in forward
        "W_e_b": init_complex_matrix(keys[16], head_dim, 1)[None],
    }
    # TODO(synk): init_weight_masks / apply_weight_masks reconstructed as identity.


class Args:
    def __init__(self):
        self.seq_len = 8
        self.d_v = None
        self.d_k = None
        self.nu = 1.0
        self.delta = 0.5
        self.eta = 1.0
        self.t_equal = 1
        self.tanh = 0
        self.device = None


# ----------------------------------------------------------------------------
# Wrapper: XLA-side precompute, tiling and pallas_call.
# ----------------------------------------------------------------------------
def _cblock(w):   # (2, out, in) -> (2*in, 2*out) :  [xr|xi] @ blk = [yr|yi]
    wr = jnp.transpose(w[0]).astype(jnp.float32)
    wi = jnp.transpose(w[1]).astype(jnp.float32)
    return jnp.concatenate(
        [jnp.concatenate([wr, wi], axis=1),
         jnp.concatenate([-wi, wr], axis=1)], axis=0)


def _cbias(b):    # (2, out) -> (1, 2*out)
    return jnp.concatenate([b[0], b[1]]).reshape(1, -1).astype(jnp.float32)


def _pick_tile_i(S, d_v, pair_itemsize, vmem_capacity=None):
    """Largest query-row tile (multiple of 8 dividing S, or S itself) whose
    pairwise working set fits ~40% of physical VMEM:
    ~14 live f32 (TI,S,Dv) intermediates + 6 double-buffered pairwise-output
    block equivalents (qij x2, xhat 2x2) in the pairwise storage dtype."""
    if S % 8 != 0:
        return S  # blocks must equal the full dim when not (8,128)-alignable
    cap = vmem_capacity if vmem_capacity else 128 * 1024 * 1024
    budget = int(0.4 * cap)
    per_row = S * d_v * (14 * 4 + 6 * pair_itemsize)
    ti = (budget // max(per_row, 1)) // 8 * 8
    ti = min(S, max(8, ti), 1024)
    while ti > 8 and S % ti != 0:
        ti -= 8
    return ti


def precision_attention_forward(params, X_q, X_k, X_v, t_measure_all, args,
                                pair_dtype=jnp.float32):
    # pair_dtype: storage dtype of the O(S^2*d_v) Q_ij / X_hat outputs.
    # Set jnp.bfloat16 on writeback-bound v5e / v6e (compute stays f32).
    f32 = jnp.float32
    B, two, S, H = X_q.shape
    assert two == 2 and S == args.seq_len
    d_v = args.d_v if args.d_v is not None else H
    d_k = args.d_k if args.d_k is not None else H
    assert d_v == d_k, "mahalanobis mixing requires d_k == d_v (as in the module)"

    lambda_h = compute_lambda_h(params["lambda1"])              # (2, d_v, 1)
    lam_r = lambda_h[0, :, 0].astype(f32)
    lam_i = lambda_h[1, :, 0].astype(f32)

    omega = (params["lambda_Omega_sqrt"][0, :, 0] ** 2).astype(f32)
    omega0 = (params["lambda_Omega0_sqrt"][0, :, 0] ** 2).astype(f32)
    gamma = (params["lambda_Gamma_sqrt"][0, :, 0] ** 2).astype(f32)
    lam_c2 = jnp.ones((d_v,), f32)                              # lambda_C == 1 in module

    # equal spacing (args.t_equal == 1 path); spacing taken from batch 0 as in the module.
    dt = (t_measure_all[0, 1] - t_measure_all[0, 0]).astype(f32)

    # ---------- XLA-side precompute hoisted out of the kernel ----------
    # complex Q/K/V projections: one block-real matmul each (no per-tile redundancy).
    xq_cat = jnp.concatenate([X_q[:, 0], X_q[:, 1]], axis=-1).astype(f32)   # (B, S, 2H)
    xk_cat = jnp.concatenate([X_k[:, 0], X_k[:, 1]], axis=-1).astype(f32)
    xv_cat = jnp.concatenate([X_v[:, 0], X_v[:, 1]], axis=-1).astype(f32)

    q_cat = xq_cat @ _cblock(params["W_q"]) + _cbias(params["W_q_b"][0, :, :, 0])
    k_cat = xk_cat @ _cblock(params["W_k"]) + _cbias(params["W_k_b"][0, :, :, 0])
    v_cat = xv_cat @ _cblock(params["W_v"]) + _cbias(params["W_v_b"][0, :, :, 0])
    qr_a, qi_a = q_cat[..., :d_k], q_cat[..., d_k:]
    kr, ki = k_cat[..., :d_k], k_cat[..., d_k:]
    vr, vi = v_cat[..., :d_v], v_cat[..., d_v:]

    # factorized state transition exp(lambda(t_i-t_j)) = P_i * N_j, centered times
    # to limit over/underflow of the individual factors.
    t_idx = (jnp.arange(S, dtype=f32) - 0.5 * (S - 1)) * dt
    ar = t_idx[:, None] * lam_r[None, :]                        # (S, Dv)
    ai = t_idx[:, None] * lam_i[None, :]
    ea, ena = jnp.exp(ar), jnp.exp(-ar)
    ca, sa = jnp.cos(ai), jnp.sin(ai)
    pr_t, pi_t, p2_t = ea * ca, ea * sa, jnp.exp(2.0 * ar)      # P_i tables
    nr_t, ni_t, n2_t = ena * ca, -ena * sa, jnp.exp(-2.0 * ar)  # N_j tables

    # fold N_j into V_j / K_j once (removes the per-pair complex exponential mults)
    nvr = nr_t * vr - ni_t * vi
    nvi = nr_t * vi + ni_t * vr
    nkr = nr_t * kr - ni_t * ki
    nki = nr_t * ki + ni_t * kr
    n2_b = jnp.broadcast_to(n2_t, (B, S, d_v))
    jtab = jnp.swapaxes(jnp.stack([nvr, nvi, nkr, nki, n2_b], axis=1), -1, -2)  # (B,5,Dv,S)

    ptab = jnp.stack([pr_t, pi_t, p2_t], axis=0)[..., None]     # (3, S, Dv, 1)
    qr_in = qr_a[..., None]                                     # (B, S, Dk, 1)
    qi_in = qi_a[..., None]

    # precision var = A + B*|exp|^2 + C*lag (per channel, lambda_C^2 folded in)
    two_lr = 2.0 * lam_r
    near0 = jnp.abs(two_lr) <= 1e-6
    inv2lr = jnp.where(near0, 0.0, 1.0 / jnp.where(near0, 1.0, two_lr))
    A = jnp.where(near0, gamma, gamma - omega * inv2lr) / lam_c2
    Bc = jnp.where(near0, omega0, omega0 + omega * inv2lr) / lam_c2
    Cc = jnp.where(near0, omega * dt, 0.0) / lam_c2
    pcoef = jnp.stack([A, Bc, Cc])[..., None]                   # (3, Dv, 1)

    # one-step prediction multiplier exp(lambda_h * dt)
    mexp = jnp.stack([jnp.exp(lam_r * dt) * jnp.cos(lam_i * dt),
                      jnp.exp(lam_r * dt) * jnp.sin(lam_i * dt)])[:, None, :]   # (2,1,Dv)

    we_blk = _cblock(params["W_e"])                             # (2Dv, 2H)
    be = _cbias(params["W_e_b"][0, :, :, 0])                    # (1, 2H)
    wp_blk = _cblock(params["W_p"])
    bp = _cbias(params["W_p_b"][0, :, :, 0])

    # ---------- tiling ----------
    pair_itemsize = int(jnp.dtype(pair_dtype).itemsize)
    vmem_cap = None
    try:
        vmem_cap = int(pltpu.get_tpu_info().vmem_capacity_bytes)
    except Exception:
        pass  # fall back to 128 MiB assumption / compiler default limit
    TI = _pick_tile_i(S, d_v, pair_itemsize, vmem_cap)
    n_ti = S // TI
    # prefer an even number of grid steps so both v7x TensorCores get whole steps
    if (B * n_ti) % 2 == 1 and TI % 16 == 0:
        TI //= 2
        n_ti = S // TI

    kernel = functools.partial(
        _precision_attn_kernel, seq_len=S, tile_i=TI,
        nu=float(args.nu), delta=float(args.delta), eta=float(args.eta))

    def _full(shape):
        n = len(shape)
        return pl.BlockSpec(shape, lambda b, it, n=n: (0,) * n)

    in_specs = [
        pl.BlockSpec((3, TI, d_v, 1), lambda b, it: (0, it, 0, 0)),   # P_i tables (i-tiled)
        pl.BlockSpec((1, TI, d_k, 1), lambda b, it: (b, it, 0, 0)),   # Re Q (i-tiled)
        pl.BlockSpec((1, TI, d_k, 1), lambda b, it: (b, it, 0, 0)),   # Im Q (i-tiled)
        pl.BlockSpec((1, 5, d_v, S), lambda b, it: (b, 0, 0, 0)),     # j-side tables (per batch)
        _full((3, d_v, 1)),                                           # precision coefs
        _full((2, 1, d_v)),                                           # exp(lambda dt)
        _full((2 * d_v, 2 * H)), _full((1, 2 * H)),                   # W_e blk, b_e
        _full((2 * d_v, 2 * H)), _full((1, 2 * H)),                   # W_p blk, b_p
    ]
    out_specs = (
        pl.BlockSpec((1, TI, 4 * H), lambda b, it: (b, it, 0)),          # [est|out] slab
        pl.BlockSpec((1, TI, d_v, S), lambda b, it: (b, it, 0, 0)),      # Q_ij (j on lanes)
        pl.BlockSpec((1, TI, 2 * d_v, S), lambda b, it: (b, it, 0, 0)),  # X_hat r|i (j on lanes)
    )
    out_shape = (
        jax.ShapeDtypeStruct((B, S, 4 * H), f32),
        jax.ShapeDtypeStruct((B, S, d_v, S), pair_dtype),
        jax.ShapeDtypeStruct((B, S, 2 * d_v, S), pair_dtype),
    )

    vmem_limit = int(vmem_cap * 3 // 4) if vmem_cap else None

    pair_elems = B * S * S * d_v
    cost = pl.CostEstimate(
        flops=int(40 * pair_elems + 4 * B * S * (2 * d_v) * (2 * H)),
        transcendentals=int(pair_elems + B * S * S + B * S * d_v),
        bytes_accessed=int(3 * pair_elems * pair_itemsize
                           + B * S * (5 * d_v + 2 * d_k + 4 * H) * 4))

    eo, qij_t, xh_t = pl.pallas_call(
        kernel,
        out_shape=out_shape,
        grid_spec=pltpu.PrefetchScalarGridSpec(
            num_scalar_prefetch=0,
            grid=(B, n_ti),
            in_specs=in_specs,
            out_specs=out_specs,
        ),
        compiler_params=pltpu.CompilerParams(
            dimension_semantics=("parallel", "parallel"),
            vmem_limit_bytes=vmem_limit),
        cost_estimate=cost,
    )(ptab, qr_in, qi_in, jtab, pcoef, mexp, we_blk, be, wp_blk, bp)

    # ---------- layout plumbing back to the module's return convention ----------
    est = jnp.stack([eo[..., :H], eo[..., H:2 * H]], axis=1)            # (B, 2, S, H)
    out = jnp.stack([eo[..., 2 * H:3 * H], eo[..., 3 * H:]], axis=1)    # (B, 2, S, H)
    qij = jnp.transpose(qij_t, (0, 1, 3, 2))[..., None]                 # (B, S, S, Dv, 1)
    xhat = jnp.stack([jnp.transpose(xh_t[:, :, :d_v, :], (0, 1, 3, 2)),
                      jnp.transpose(xh_t[:, :, d_v:, :], (0, 1, 3, 2))],
                     axis=1)                                            # (B, 2, S, S, Dv)
    return est, out, qij, xhat, lambda_h


if __name__ == "__main__":
    args = Args()
    B, H, S = 2, 8, args.seq_len

    key = jax.random.PRNGKey(0)
    kp, kq, kk, kv = jax.random.split(key, 4)
    params = init_params(kp, H, H, H)

    X_q = jax.random.normal(kq, (B, 2, S, H), jnp.float32)
    X_k = jax.random.normal(kk, (B, 2, S, H), jnp.float32)
    X_v = jax.random.normal(kv, (B, 2, S, H), jnp.float32)
    t_measure_all = jnp.broadcast_to(
        jnp.arange(S + 1, dtype=jnp.float32) * 0.1, (B, S + 1))

    est, out, Q_ij, X_hat, lambda_h = precision_attention_forward(
        params, X_q, X_k, X_v, t_measure_all, args)
    jax.block_until_ready((est, out, Q_ij, X_hat, lambda_h))
    print("KERNEL_OK")
</pallas_src>

<mosaic_0001>
module attributes {stable_mosaic.version = 11 : i64} {
  func.func @_precision_attn_kernel(%arg0: i32, %arg1: i32, %arg2: memref<3x8x8x1xf32, #tpu.memory_space<vmem>>, %arg3: memref<1x8x8x1xf32, #tpu.memory_space<vmem>>, %arg4: memref<1x8x8x1xf32, #tpu.memory_space<vmem>>, %arg5: memref<1x5x8x8xf32, #tpu.memory_space<vmem>>, %arg6: memref<3x8x1xf32, #tpu.memory_space<vmem>>, %arg7: memref<2x1x8xf32, #tpu.memory_space<vmem>>, %arg8: memref<16x16xf32, #tpu.memory_space<vmem>>, %arg9: memref<1x16xf32, #tpu.memory_space<vmem>>, %arg10: memref<16x16xf32, #tpu.memory_space<vmem>>, %arg11: memref<1x16xf32, #tpu.memory_space<vmem>>, %arg12: memref<1x8x32xf32, #tpu.memory_space<vmem>>, %arg13: memref<1x8x8x8xf32, #tpu.memory_space<vmem>>, %arg14: memref<1x8x16x8xf32, #tpu.memory_space<vmem>>) attributes {dimension_semantics = [#tpu.dimension_semantics<parallel>, #tpu.dimension_semantics<parallel>], iteration_bounds = array<i64: 2, 1>, scalar_prefetch = 0 : i64, scratch_operands = 0 : i64, tpu.core_type = #tpu.core_type<tc>, window_params = [{transform_indices = @transform_0, window_bounds = array<i64: 3, 8, 8, 1>}, {transform_indices = @transform_1, window_bounds = array<i64: 1, 8, 8, 1>}, {transform_indices = @transform_2, window_bounds = array<i64: 1, 8, 8, 1>}, {transform_indices = @transform_3, window_bounds = array<i64: 1, 5, 8, 8>}, {pipeline_mode = #tpu.pipeline_mode<synchronous>, transform_indices = @transform_4, window_bounds = array<i64: 3, 8, 1>}, {pipeline_mode = #tpu.pipeline_mode<synchronous>, transform_indices = @transform_5, window_bounds = array<i64: 2, 1, 8>}, {pipeline_mode = #tpu.pipeline_mode<synchronous>, transform_indices = @transform_6, window_bounds = array<i64: 16, 16>}, {pipeline_mode = #tpu.pipeline_mode<synchronous>, transform_indices = @transform_7, window_bounds = array<i64: 1, 16>}, {pipeline_mode = #tpu.pipeline_mode<synchronous>, transform_indices = @transform_8, window_bounds = array<i64: 16, 16>}, {pipeline_mode = #tpu.pipeline_mode<synchronous>, transform_indices = @transform_9, window_bounds = array<i64: 1, 16>}, {transform_indices = @transform_10, window_bounds = array<i64: 1, 8, 32>}, {transform_indices = @transform_11, window_bounds = array<i64: 1, 8, 8, 8>}, {transform_indices = @transform_12, window_bounds = array<i64: 1, 8, 16, 8>}]} {
    %c8_i32 = arith.constant 8 : i32
    %0 = arith.muli %arg1, %c8_i32 : i32
    %c0 = arith.constant 0 : index
    %c0_0 = arith.constant 0 : index
    %c0_1 = arith.constant 0 : index
    %c0_2 = arith.constant 0 : index
    %1 = vector.load %arg2[%c0, %c0_0, %c0_1, %c0_2] : memref<3x8x8x1xf32, #tpu.memory_space<vmem>>, vector<1x8x8x1xf32>
    %2 = vector.shape_cast %1 : vector<1x8x8x1xf32> to vector<8x8x1xf32>
    %c1 = arith.constant 1 : index
    %c0_3 = arith.constant 0 : index
    %c0_4 = arith.constant 0 : index
    %c0_5 = arith.constant 0 : index
    %3 = vector.load %arg2[%c1, %c0_3, %c0_4, %c0_5] : memref<3x8x8x1xf32, #tpu.memory_space<vmem>>, vector<1x8x8x1xf32>
    %4 = vector.shape_cast %3 : vector<1x8x8x1xf32> to vector<8x8x1xf32>
    %c2 = arith.constant 2 : index
    %c0_6 = arith.constant 0 : index
    %c0_7 = arith.constant 0 : index
    %c0_8 = arith.constant 0 : index
    %5 = vector.load %arg2[%c2, %c0_6, %c0_7, %c0_8] : memref<3x8x8x1xf32, #tpu.memory_space<vmem>>, vector<1x8x8x1xf32>
    %6 = vector.shape_cast %5 : vector<1x8x8x1xf32> to vector<8x8x1xf32>
    %c0_9 = arith.constant 0 : index
    %c0_10 = arith.constant 0 : index
    %c0_11 = arith.constant 0 : index
    %c0_12 = arith.constant 0 : index
    %7 = vector.load %arg3[%c0_9, %c0_10, %c0_11, %c0_12] : memref<1x8x8x1xf32, #tpu.memory_space<vmem>>, vector<1x8x8x1xf32>
    %8 = vector.shape_cast %7 : vector<1x8x8x1xf32> to vector<8x8x1xf32>
    %c0_13 = arith.constant 0 : index
    %c0_14 = arith.constant 0 : index
    %c0_15 = arith.constant 0 : index
    %c0_16 = arith.constant 0 : index
    %9 = vector.load %arg4[%c0_13, %c0_14, %c0_15, %c0_16] : memref<1x8x8x1xf32, #tpu.memory_space<vmem>>, vector<1x8x8x1xf32>
    %10 = vector.shape_cast %9 : vector<1x8x8x1xf32> to vector<8x8x1xf32>
    %c0_17 = arith.constant 0 : index
    %c0_18 = arith.constant 0 : index
    %c0_19 = arith.constant 0 : index
    %c0_20 = arith.constant 0 : index
    %11 = vector.load %arg5[%c0_17, %c0_18, %c0_19, %c0_20] : memref<1x5x8x8xf32, #tpu.memory_space<vmem>>, vector<1x1x8x8xf32>
    %12 = vector.shape_cast %11 : vector<1x1x8x8xf32> to vector<8x8xf32>
    %c0_21 = arith.constant 0 : index
    %c1_22 = arith.constant 1 : index
    %c0_23 = arith.constant 0 : index
    %c0_24 = arith.constant 0 : index
    %13 = vector.load %arg5[%c0_21, %c1_22, %c0_23, %c0_24] : memref<1x5x8x8xf32, #tpu.memory_space<vmem>>, vector<1x1x8x8xf32>
    %14 = vector.shape_cast %13 : vector<1x1x8x8xf32> to vector<8x8xf32>
    %c0_25 = arith.constant 0 : index
    %c2_26 = arith.constant 2 : index
    %c0_27 = arith.constant 0 : index
    %c0_28 = arith.constant 0 : index
    %15 = vector.load %arg5[%c0_25, %c2_26, %c0_27, %c0_28] : memref<1x5x8x8xf32, #tpu.memory_space<vmem>>, vector<1x1x8x8xf32>
    %16 = vector.shape_cast %15 : vector<1x1x8x8xf32> to vector<8x8xf32>
    %c0_29 = arith.constant 0 : index
    %c3 = arith.constant 3 : index
    %c0_30 = arith.constant 0 : index
    %c0_31 = arith.constant 0 : index
    %17 = vector.load %arg5[%c0_29, %c3, %c0_30, %c0_31] : memref<1x5x8x8xf32, #tpu.memory_space<vmem>>, vector<1x1x8x8xf32>
    %18 = vector.shape_cast %17 : vector<1x1x8x8xf32> to vector<8x8xf32>
    %c0_32 = arith.constant 0 : index
    %c4 = arith.constant 4 : index
    %c0_33 = arith.constant 0 : index
    %c0_34 = arith.constant 0 : index
    %19 = vector.load %arg5[%c0_32, %c4, %c0_33, %c0_34] : memref<1x5x8x8xf32, #tpu.memory_space<vmem>>, vector<1x1x8x8xf32>
    %20 = vector.shape_cast %19 : vector<1x1x8x8xf32> to vector<8x8xf32>
    %21 = tpu.iota {dimensions = array<i32: 0>} : vector<8x1x8xi32>
    %22 = vector.broadcast %0 : i32 to vector<8x1x8xi32>
    %23 = arith.addi %21, %22 : vector<8x1x8xi32>
    %24 = tpu.iota {dimensions = array<i32: 2>} : vector<8x1x8xi32>
    %25 = arith.cmpi sge, %23, %24 : vector<8x1x8xi32>
    %26 = arith.subi %23, %24 : vector<8x1x8xi32>
    %c0_i32 = arith.constant 0 : i32
    %27 = vector.broadcast %c0_i32 : i32 to vector<8x1x8xi32>
    %28 = arith.maxsi %26, %27 : vector<8x1x8xi32>
    %29 = arith.sitofp %28 : vector<8x1x8xi32> to vector<8x1x8xf32>
    %30 = vector.shape_cast %12 : vector<8x8xf32> to vector<1x8x8xf32>
    %31 = vector.broadcast %2 : vector<8x8x1xf32> to vector<8x8x8xf32>
    %32 = vector.broadcast %30 : vector<1x8x8xf32> to vector<8x8x8xf32>
    %33 = arith.mulf %31, %32 : vector<8x8x8xf32>
    %34 = vector.shape_cast %14 : vector<8x8xf32> to vector<1x8x8xf32>
    %35 = vector.broadcast %4 : vector<8x8x1xf32> to vector<8x8x8xf32>
    %36 = vector.broadcast %34 : vector<1x8x8xf32> to vector<8x8x8xf32>
    %37 = arith.mulf %35, %36 : vector<8x8x8xf32>
    %38 = arith.subf %33, %37 : vector<8x8x8xf32>
    %cst = arith.constant 0.000000e+00 : f32
    %39 = vector.shape_cast %25 : vector<8x1x8xi1> to vector<8x1x8xi1>
    %40 = vector.broadcast %39 : vector<8x1x8xi1> to vector<8x8x8xi1>
    %41 = vector.broadcast %cst : f32 to vector<8x8x8xf32>
    %42 = arith.select %40, %38, %41 : vector<8x8x8xi1>, vector<8x8x8xf32>
    %43 = vector.shape_cast %14 : vector<8x8xf32> to vector<1x8x8xf32>
    %44 = vector.broadcast %2 : vector<8x8x1xf32> to vector<8x8x8xf32>
    %45 = vector.broadcast %43 : vector<1x8x8xf32> to vector<8x8x8xf32>
    %46 = arith.mulf %44, %45 : vector<8x8x8xf32>
    %47 = vector.shape_cast %12 : vector<8x8xf32> to vector<1x8x8xf32>
    %48 = vector.broadcast %4 : vector<8x8x1xf32> to vector<8x8x8xf32>
    %49 = vector.broadcast %47 : vector<1x8x8xf32> to vector<8x8x8xf32>
    %50 = arith.mulf %48, %49 : vector<8x8x8xf32>
    %51 = arith.addf %46, %50 : vector<8x8x8xf32>
    %cst_35 = arith.constant 0.000000e+00 : f32
    %52 = vector.shape_cast %25 : vector<8x1x8xi1> to vector<8x1x8xi1>
    %53 = vector.broadcast %52 : vector<8x1x8xi1> to vector<8x8x8xi1>
    %54 = vector.broadcast %cst_35 : f32 to vector<8x8x8xf32>
    %55 = arith.select %53, %51, %54 : vector<8x8x8xi1>, vector<8x8x8xf32>
    %56 = vector.shape_cast %16 : vector<8x8xf32> to vector<1x8x8xf32>
    %57 = vector.broadcast %2 : vector<8x8x1xf32> to vector<8x8x8xf32>
    %58 = vector.broadcast %56 : vector<1x8x8xf32> to vector<8x8x8xf32>
    %59 = arith.mulf %57, %58 : vector<8x8x8xf32>
    %60 = vector.shape_cast %18 : vector<8x8xf32> to vector<1x8x8xf32>
    %61 = vector.broadcast %4 : vector<8x8x1xf32> to vector<8x8x8xf32>
    %62 = vector.broadcast %60 : vector<1x8x8xf32> to vector<8x8x8xf32>
    %63 = arith.mulf %61, %62 : vector<8x8x8xf32>
    %64 = arith.subf %59, %63 : vector<8x8x8xf32>
    %65 = vector.broadcast %8 : vector<8x8x1xf32> to vector<8x8x8xf32>
    %66 = arith.subf %65, %64 : vector<8x8x8xf32>
    %67 = vector.shape_cast %18 : vector<8x8xf32> to vector<1x8x8xf32>
    %68 = vector.broadcast %2 : vector<8x8x1xf32> to vector<8x8x8xf32>
    %69 = vector.broadcast %67 : vector<1x8x8xf32> to vector<8x8x8xf32>
    %70 = arith.mulf %68, %69 : vector<8x8x8xf32>
    %71 = vector.shape_cast %16 : vector<8x8xf32> to vector<1x8x8xf32>
    %72 = vector.broadcast %4 : vector<8x8x1xf32> to vector<8x8x8xf32>
    %73 = vector.broadcast %71 : vector<1x8x8xf32> to vector<8x8x8xf32>
    %74 = arith.mulf %72, %73 : vector<8x8x8xf32>
    %75 = arith.addf %70, %74 : vector<8x8x8xf32>
    %76 = vector.broadcast %10 : vector<8x8x1xf32> to vector<8x8x8xf32>
    %77 = arith.subf %76, %75 : vector<8x8x8xf32>
    %78 = vector.shape_cast %20 : vector<8x8xf32> to vector<1x8x8xf32>
    %79 = vector.broadcast %6 : vector<8x8x1xf32> to vector<8x8x8xf32>
    %80 = vector.broadcast %78 : vector<1x8x8xf32> to vector<8x8x8xf32>
    %81 = arith.mulf %79, %80 : vector<8x8x8xf32>
    %c0_36 = arith.constant 0 : index
    %c0_37 = arith.constant 0 : index
    %c0_38 = arith.constant 0 : index
    %82 = vector.load %arg6[%c0_36, %c0_37, %c0_38] : memref<3x8x1xf32, #tpu.memory_space<vmem>>, vector<1x8x1xf32>
    %83 = vector.shape_cast %82 : vector<1x8x1xf32> to vector<8x1xf32>
    %c1_39 = arith.constant 1 : index
    %c0_40 = arith.constant 0 : index
    %c0_41 = arith.constant 0 : index
    %84 = vector.load %arg6[%c1_39, %c0_40, %c0_41] : memref<3x8x1xf32, #tpu.memory_space<vmem>>, vector<1x8x1xf32>
    %85 = vector.shape_cast %84 : vector<1x8x1xf32> to vector<8x1xf32>
    %86 = vector.shape_cast %85 : vector<8x1xf32> to vector<1x8x1xf32>
    %87 = vector.broadcast %86 : vector<1x8x1xf32> to vector<8x8x8xf32>
    %88 = arith.mulf %87, %81 : vector<8x8x8xf32>
    %89 = vector.shape_cast %83 : vector<8x1xf32> to vector<1x8x1xf32>
    %90 = vector.broadcast %89 : vector<1x8x1xf32> to vector<8x8x8xf32>
    %91 = arith.addf %90, %88 : vector<8x8x8xf32>
    %c2_42 = arith.constant 2 : index
    %c0_43 = arith.constant 0 : index
    %c0_44 = arith.constant 0 : index
    %92 = vector.load %arg6[%c2_42, %c0_43, %c0_44] : memref<3x8x1xf32, #tpu.memory_space<vmem>>, vector<1x8x1xf32>
    %93 = vector.shape_cast %92 : vector<1x8x1xf32> to vector<8x1xf32>
    %94 = vector.shape_cast %93 : vector<8x1xf32> to vector<1x8x1xf32>
    %95 = vector.broadcast %94 : vector<1x8x1xf32> to vector<8x8x8xf32>
    %96 = vector.broadcast %29 : vector<8x1x8xf32> to vector<8x8x8xf32>
    %97 = arith.mulf %95, %96 : vector<8x8x8xf32>
    %98 = arith.addf %91, %97 : vector<8x8x8xf32>
    %99 = tpu.reciprocal %98 {approx = true} : vector<8x8x8xf32> -> vector<8x8x8xf32>
    %100 = arith.mulf %66, %66 : vector<8x8x8xf32>
    %101 = arith.mulf %77, %77 : vector<8x8x8xf32>
    %102 = arith.addf %100, %101 : vector<8x8x8xf32>
    %103 = arith.mulf %99, %102 : vector<8x8x8xf32>
    %cst_45 = arith.constant dense<0.000000e+00> : vector<8x8xf32>
    %104 = vector.multi_reduction <add>, %103, %cst_45 [1] : vector<8x8x8xf32> to vector<8x8xf32>
    %105 = vector.shape_cast %104 : vector<8x8xf32> to vector<8x1x8xf32>
    %cst_46 = arith.constant 1.000000e+00 : f32
    %106 = vector.broadcast %cst_46 : f32 to vector<8x1x8xf32>
    %107 = arith.mulf %106, %105 : vector<8x1x8xf32>
    %cst_47 = arith.constant 1.000000e+00 : f32
    %108 = vector.broadcast %cst_47 : f32 to vector<8x1x8xf32>
    %109 = arith.addf %108, %107 : vector<8x1x8xf32>
    %cst_48 = arith.constant 1.000000e+00 : f32
    %110 = vector.broadcast %cst_48 : f32 to vector<8x1x8xf32>
    %111 = arith.divf %110, %109 : vector<8x1x8xf32>
    %112 = vector.broadcast %111 : vector<8x1x8xf32> to vector<8x8x8xf32>
    %113 = arith.mulf %99, %112 : vector<8x8x8xf32>
    %cst_49 = arith.constant 0.000000e+00 : f32
    %114 = vector.shape_cast %25 : vector<8x1x8xi1> to vector<8x1x8xi1>
    %115 = vector.broadcast %114 : vector<8x1x8xi1> to vector<8x8x8xi1>
    %116 = vector.broadcast %cst_49 : f32 to vector<8x8x8xf32>
    %117 = arith.select %115, %113, %116 : vector<8x8x8xi1>, vector<8x8x8xf32>
    %cst_50 = arith.constant dense<0.000000e+00> : vector<8x8xf32>
    %118 = vector.multi_reduction <add>, %117, %cst_50 [2] : vector<8x8x8xf32> to vector<8x8xf32>
    %119 = vector.shape_cast %118 : vector<8x8xf32> to vector<8x8x1xf32>
    %cst_51 = arith.constant 1.000000e+00 : f32
    %120 = vector.broadcast %cst_51 : f32 to vector<8x8x1xf32>
    %121 = arith.divf %120, %119 : vector<8x8x1xf32>
    %122 = vector.broadcast %121 : vector<8x8x1xf32> to vector<8x8x8xf32>
    %123 = arith.mulf %117, %122 : vector<8x8x8xf32>
    %124 = arith.mulf %123, %42 : vector<8x8x8xf32>
    %cst_52 = arith.constant dense<0.000000e+00> : vector<8x8xf32>
    %125 = vector.multi_reduction <add>, %124, %cst_52 [2] : vector<8x8x8xf32> to vector<8x8xf32>
    %126 = arith.mulf %123, %55 : vector<8x8x8xf32>
    %cst_53 = arith.constant dense<0.000000e+00> : vector<8x8xf32>
    %127 = vector.multi_reduction <add>, %126, %cst_53 [2] : vector<8x8x8xf32> to vector<8x8xf32>
    %128 = tpu.concatenate %125, %127 in 1 : vector<8x8xf32>, vector<8x8xf32> -> vector<8x16xf32>
    %c0_54 = arith.constant 0 : index
    %c0_55 = arith.constant 0 : index
    %129 = vector.load %arg8[%c0_54, %c0_55] : memref<16x16xf32, #tpu.memory_space<vmem>>, vector<16x16xf32>
    %cst_56 = arith.constant dense<0.000000e+00> : vector<8x16xf32>
    %130 = tpu.matmul %128, %129, %cst_56 {dimension_numbers = #tpu.dot_dimension_numbers<[1], [0], [0], [1], [0, 0, 1, 1], [], []>} : vector<8x16xf32>, vector<16x16xf32>, vector<8x16xf32> -> vector<8x16xf32>
    %c0_57 = arith.constant 0 : index
    %c0_58 = arith.constant 0 : index
    %131 = vector.load %arg9[%c0_57, %c0_58] : memref<1x16xf32, #tpu.memory_space<vmem>>, vector<1x16xf32>
    %132 = vector.broadcast %131 : vector<1x16xf32> to vector<8x16xf32>
    %133 = arith.addf %130, %132 : vector<8x16xf32>
    %c0_59 = arith.constant 0 : index
    %c0_60 = arith.constant 0 : index
    %c0_61 = arith.constant 0 : index
    %134 = vector.load %arg7[%c0_59, %c0_60, %c0_61] : memref<2x1x8xf32, #tpu.memory_space<vmem>>, vector<1x1x8xf32>
    %135 = vector.shape_cast %134 : vector<1x1x8xf32> to vector<1x8xf32>
    %c1_62 = arith.constant 1 : index
    %c0_63 = arith.constant 0 : index
    %c0_64 = arith.constant 0 : index
    %136 = vector.load %arg7[%c1_62, %c0_63, %c0_64] : memref<2x1x8xf32, #tpu.memory_space<vmem>>, vector<1x1x8xf32>
    %137 = vector.shape_cast %136 : vector<1x1x8xf32> to vector<1x8xf32>
    %138 = vector.broadcast %135 : vector<1x8xf32> to vector<8x8xf32>
    %139 = arith.mulf %138, %125 : vector<8x8xf32>
    %140 = vector.broadcast %137 : vector<1x8xf32> to vector<8x8xf32>
    %141 = arith.mulf %140, %127 : vector<8x8xf32>
    %142 = arith.subf %139, %141 : vector<8x8xf32>
    %143 = vector.broadcast %135 : vector<1x8xf32> to vector<8x8xf32>
    %144 = arith.mulf %143, %127 : vector<8x8xf32>
    %145 = vector.broadcast %137 : vector<1x8xf32> to vector<8x8xf32>
    %146 = arith.mulf %145, %125 : vector<8x8xf32>
    %147 = arith.addf %144, %146 : vector<8x8xf32>
    %148 = tpu.concatenate %142, %147 in 1 : vector<8x8xf32>, vector<8x8xf32> -> vector<8x16xf32>
    %c0_65 = arith.constant 0 : index
    %c0_66 = arith.constant 0 : index
    %149 = vector.load %arg10[%c0_65, %c0_66] : memref<16x16xf32, #tpu.memory_space<vmem>>, vector<16x16xf32>
    %cst_67 = arith.constant dense<0.000000e+00> : vector<8x16xf32>
    %150 = tpu.matmul %148, %149, %cst_67 {dimension_numbers = #tpu.dot_dimension_numbers<[1], [0], [0], [1], [0, 0, 1, 1], [], []>} : vector<8x16xf32>, vector<16x16xf32>, vector<8x16xf32> -> vector<8x16xf32>
    %c0_68 = arith.constant 0 : index
    %c0_69 = arith.constant 0 : index
    %151 = vector.load %arg11[%c0_68, %c0_69] : memref<1x16xf32, #tpu.memory_space<vmem>>, vector<1x16xf32>
    %152 = vector.broadcast %151 : vector<1x16xf32> to vector<8x16xf32>
    %153 = arith.addf %150, %152 : vector<8x16xf32>
    %cst_70 = arith.constant 5.000000e-01 : f32
    %154 = vector.broadcast %cst_70 : f32 to vector<8x16xf32>
    %155 = arith.mulf %154, %153 : vector<8x16xf32>
    %cst_71 = arith.constant 1.000000e+00 : f32
    %156 = vector.broadcast %cst_71 : f32 to vector<8x16xf32>
    %157 = arith.mulf %156, %133 : vector<8x16xf32>
    %158 = arith.addf %155, %157 : vector<8x16xf32>
    %159 = tpu.concatenate %133, %158 in 1 : vector<8x16xf32>, vector<8x16xf32> -> vector<8x32xf32>
    %c0_72 = arith.constant 0 : index
    %c0_73 = arith.constant 0 : index
    %c0_74 = arith.constant 0 : index
    %160 = vector.load %arg12[%c0_72, %c0_73, %c0_74] : memref<1x8x32xf32, #tpu.memory_space<vmem>>, vector<1x8x32xf32>
    %161 = vector.shape_cast %160 : vector<1x8x32xf32> to vector<8x32xf32>
    %162 = vector.shape_cast %159 : vector<8x32xf32> to vector<1x8x32xf32>
    tpu.vector_store %arg12[%c0_72, %c0_73, %c0_74], %162 {strides = array<i32>} : memref<1x8x32xf32, #tpu.memory_space<vmem>>, vector<1x8x32xf32>,
    %c0_75 = arith.constant 0 : index
    %c0_76 = arith.constant 0 : index
    %c0_77 = arith.constant 0 : index
    %c0_78 = arith.constant 0 : index
    %163 = vector.load %arg13[%c0_75, %c0_76, %c0_77, %c0_78] : memref<1x8x8x8xf32, #tpu.memory_space<vmem>>, vector<1x8x8x8xf32>
    %164 = vector.shape_cast %163 : vector<1x8x8x8xf32> to vector<8x8x8xf32>
    %165 = vector.shape_cast %123 : vector<8x8x8xf32> to vector<1x8x8x8xf32>
    tpu.vector_store %arg13[%c0_75, %c0_76, %c0_77, %c0_78], %165 {strides = array<i32>} : memref<1x8x8x8xf32, #tpu.memory_space<vmem>>, vector<1x8x8x8xf32>,
    %166 = tpu.concatenate %42, %55 in 1 : vector<8x8x8xf32>, vector<8x8x8xf32> -> vector<8x16x8xf32>
    %c0_79 = arith.constant 0 : index
    %c0_80 = arith.constant 0 : index
    %c0_81 = arith.constant 0 : index
    %c0_82 = arith.constant 0 : index
    %167 = vector.load %arg14[%c0_79, %c0_80, %c0_81, %c0_82] : memref<1x8x16x8xf32, #tpu.memory_space<vmem>>, vector<1x8x16x8xf32>
    %168 = vector.shape_cast %167 : vector<1x8x16x8xf32> to vector<8x16x8xf32>
    %169 = vector.shape_cast %166 : vector<8x16x8xf32> to vector<1x8x16x8xf32>
    tpu.vector_store %arg14[%c0_79, %c0_80, %c0_81, %c0_82], %169 {strides = array<i32>} : memref<1x8x16x8xf32, #tpu.memory_space<vmem>>, vector<1x8x16x8xf32>,
    return
  }
  func.func @transform_0(%arg0: i32, %arg1: i32) -> (i32, i32, i32, i32) {
    %c0_i32 = arith.constant 0 : i32
    %c0_i32_0 = arith.constant 0 : i32
    %c0_i32_1 = arith.constant 0 : i32
    %c0_i32_2 = arith.constant 0 : i32
    return %c0_i32, %arg1, %c0_i32_0, %c0_i32_1 : i32, i32, i32, i32
  }
  func.func @transform_1(%arg0: i32, %arg1: i32) -> (i32, i32, i32, i32) {
    %c0_i32 = arith.constant 0 : i32
    %c0_i32_0 = arith.constant 0 : i32
    %c0_i32_1 = arith.constant 0 : i32
    return %arg0, %arg1, %c0_i32, %c0_i32_0 : i32, i32, i32, i32
  }
  func.func @transform_2(%arg0: i32, %arg1: i32) -> (i32, i32, i32, i32) {
    %c0_i32 = arith.constant 0 : i32
    %c0_i32_0 = arith.constant 0 : i32
    %c0_i32_1 = arith.constant 0 : i32
    return %arg0, %arg1, %c0_i32, %c0_i32_0 : i32, i32, i32, i32
  }
  func.func @transform_3(%arg0: i32, %arg1: i32) -> (i32, i32, i32, i32) {
    %c0_i32 = arith.constant 0 : i32
    %c0_i32_0 = arith.constant 0 : i32
    %c0_i32_1 = arith.constant 0 : i32
    %c0_i32_2 = arith.constant 0 : i32
    return %arg0, %c0_i32, %c0_i32_0, %c0_i32_1 : i32, i32, i32, i32
  }
  func.func @transform_4(%arg0: i32, %arg1: i32) -> (i32, i32, i32) {
    %c0_i32 = arith.constant 0 : i32
    %c0_i32_0 = arith.constant 0 : i32
    %c0_i32_1 = arith.constant 0 : i32
    %c0_i32_2 = arith.constant 0 : i32
    return %c0_i32, %c0_i32_0, %c0_i32_1 : i32, i32, i32
  }
  func.func @transform_5(%arg0: i32, %arg1: i32) -> (i32, i32, i32) {
    %c0_i32 = arith.constant 0 : i32
    %c0_i32_0 = arith.constant 0 : i32
    %c0_i32_1 = arith.constant 0 : i32
    %c0_i32_2 = arith.constant 0 : i32
    return %c0_i32, %c0_i32_0, %c0_i32_1 : i32, i32, i32
  }
  func.func @transform_6(%arg0: i32, %arg1: i32) -> (i32, i32) {
    %c0_i32 = arith.constant 0 : i32
    %c0_i32_0 = arith.constant 0 : i32
    %c0_i32_1 = arith.constant 0 : i32
    return %c0_i32, %c0_i32_0 : i32, i32
  }
  func.func @transform_7(%arg0: i32, %arg1: i32) -> (i32, i32) {
    %c0_i32 = arith.constant 0 : i32
    %c0_i32_0 = arith.constant 0 : i32
    %c0_i32_1 = arith.constant 0 : i32
    return %c0_i32, %c0_i32_0 : i32, i32
  }
  func.func @transform_8(%arg0: i32, %arg1: i32) -> (i32, i32) {
    %c0_i32 = arith.constant 0 : i32
    %c0_i32_0 = arith.constant 0 : i32
    %c0_i32_1 = arith.constant 0 : i32
    return %c0_i32, %c0_i32_0 : i32, i32
  }
  func.func @transform_9(%arg0: i32, %arg1: i32) -> (i32, i32) {
    %c0_i32 = arith.constant 0 : i32
    %c0_i32_0 = arith.constant 0 : i32
    %c0_i32_1 = arith.constant 0 : i32
    return %c0_i32, %c0_i32_0 : i32, i32
  }
  func.func @transform_10(%arg0: i32, %arg1: i32) -> (i32, i32, i32) {
    %c0_i32 = arith.constant 0 : i32
    %c0_i32_0 = arith.constant 0 : i32
    return %arg0, %arg1, %c0_i32 : i32, i32, i32
  }
  func.func @transform_11(%arg0: i32, %arg1: i32) -> (i32, i32, i32, i32) {
    %c0_i32 = arith.constant 0 : i32
    %c0_i32_0 = arith.constant 0 : i32
    %c0_i32_1 = arith.constant 0 : i32
    return %arg0, %arg1, %c0_i32, %c0_i32_0 : i32, i32, i32, i32
  }
  func.func @transform_12(%arg0: i32, %arg1: i32) -> (i32, i32, i32, i32) {
    %c0_i32 = arith.constant 0 : i32
    %c0_i32_0 = arith.constant 0 : i32
    %c0_i32_1 = arith.constant 0 : i32
    return %arg0, %arg1, %c0_i32, %c0_i32_0 : i32, i32, i32, i32
  }
}

</mosaic_0001>

<llo_original>
// kernel: tpu_custom_call.1
$region0: #{tpu_custom_call.1}
  #allocation0 [shape = 'u32[]', space=smem, size = 0x4, offset = 0x4, fixed_abs, tag = 'smem constant byte address 0x4 - core index']
  #allocation1 [shape = 'u32[144,128]{1,0:T(1,128)}', space=vmem, size = 0x12000, scoped, tag = 'internal scratch']
  %s0 = inlined_call_operand.vmem [shape: f32[3,8,8,1], index: 0, kind: input, shape index: {}]
  %s1 = inlined_call_operand.vmem [shape: f32[2,8,8,1], index: 1, kind: input, shape index: {}]
  %s2 = inlined_call_operand.vmem [shape: f32[2,8,8,1], index: 2, kind: input, shape index: {}]
  %s3 = inlined_call_operand.vmem [shape: f32[2,5,8,8], index: 3, kind: input, shape index: {}]
  %s4 = inlined_call_operand.vmem [shape: f32[3,8,1], index: 4, kind: input, shape index: {}]
  %s5 = inlined_call_operand.vmem [shape: f32[2,1,8], index: 5, kind: input, shape index: {}]
  %s6 = inlined_call_operand.vmem [shape: f32[16,16], index: 6, kind: input, shape index: {}]
  %s7 = inlined_call_operand.vmem [shape: f32[1,16], index: 7, kind: input, shape index: {}]
  %s8 = inlined_call_operand.vmem [shape: f32[16,16], index: 8, kind: input, shape index: {}]
  %s9 = inlined_call_operand.vmem [shape: f32[1,16], index: 9, kind: input, shape index: {}]
  %s10 = inlined_call_operand.hbm [shape: f32[2,8,32], index: 10, kind: output, shape index: {0}]
  %s11 = inlined_call_operand.hbm [shape: f32[2,8,8,8], index: 11, kind: output, shape index: {1}]
  %s12 = inlined_call_operand.vmem [shape: f32[2,8,16,8], index: 12, kind: output, shape index: {2}]
  %13 = xla_tuple %s10, %s11, %s12
  %s14 = sld [smem:[#allocation0]]
  $region89: #{tpu_custom_call.1} parent=0
    _
  %s16 = ssub.s32 1, %s14
  %s17 = scalar_select 0, %s16, %s14
  $region1: #{tpu_custom_call.1} parent=0
    #allocation2 [shape = 'u8[8192]{0}', space=vmem, size = 0x2000, scoped, tag = 'output window, operand 0']
    #allocation3 [shape = 's32[2]{0}', space=sflag, size = 0x8, scoped, tag = 'scoped memory for tpu_custom_call.1']
    #allocation4 [shape = 'u8[65536]{0}', space=vmem, size = 0x10000, scoped, tag = 'output window, operand 1']
    #allocation5 [shape = 's32[2]{0}', space=sflag, size = 0x8, scoped, tag = 'scoped memory for tpu_custom_call.1']
    %18 = vsyncpa [#allocation3], 0
    %s19 = scalar_lea.sflag [#allocation3], 1
    %20 = vsyncpa %s19, 0
    %21 = vsyncpa [#allocation5], 0
    %s22 = scalar_lea.sflag [#allocation5], 1
    %23 = vsyncpa %s22, 0
    loop: start=0, step=1, limit=4
    $region2: #{tpu_custom_call.1} parent=1 // loop_pre_header
      _
    $region3: #{tpu_custom_call.1} parent=1 // loop_header
      %s25 = sphi 0, %s29
      %p26 = scmp.ge.s32.totalorder %s25, 4
      %s32 = sphi 0, %s44
      %s33 = sphi 0, %s40
      %s34 = sphi 0, %s32
      %s35 = sphi 0, %s33
      %s36 = sphi 0, %s34
      %s37 = sphi 0, %s35
      %s47 = sphi 0, %s49
      %s50 = sphi 0, %s47
      %s51 = sphi 0, %s50
      %s67 = sphi 0, %s51
      %s75 = sphi 0, %s77
      %s78 = sphi 0, %s75
      %s79 = sphi 0, %s78
      %s95 = sphi 0, %s79
      %s103 = sphi 0, %s105
      %s106 = sphi 0, %s103
      %s107 = sphi 0, %s106
      %s123 = sphi 0, %s107
      %s129 = sphi 0, %s131
      %s132 = sphi 0, %s129
      %s133 = sphi 0, %s132
      %s149 = sphi 0, %s133
      %s153 = sphi 0, %s153
      %s155 = sphi 0, %s153
      %s156 = sphi 0, %s155
      %s170 = sphi 0, %s156
      %s174 = sphi 0, %s174
      %s176 = sphi 0, %s174
      %s177 = sphi 0, %s176
      %s191 = sphi 0, %s177
      %s195 = sphi 0, %s195
      %s197 = sphi 0, %s195
      %s198 = sphi 0, %s197
      %s212 = sphi 0, %s198
      %s216 = sphi 0, %s216
      %s218 = sphi 0, %s216
      %s219 = sphi 0, %s218
      %s233 = sphi 0, %s219
      %s237 = sphi 0, %s237
      %s239 = sphi 0, %s237
      %s240 = sphi 0, %s239
      %s254 = sphi 0, %s240
      %s258 = sphi 0, %s258
      %s260 = sphi 0, %s258
      %s261 = sphi 0, %s260
      %s275 = sphi 0, %s261
      %s283 = sphi 0, %s285
      %s286 = sphi 0, %s283
      %s287 = sphi 0, %s286
      %s303 = sphi 0, %s287
      %s311 = sphi 0, %s313
      %s314 = sphi 0, %s311
      %s315 = sphi 0, %s314
      %s331 = sphi 0, %s315
      %s339 = sphi 0, %s341
      %s342 = sphi 0, %s339
      %s343 = sphi 0, %s342
      %s359 = sphi 0, %s343
    $region4: #{tpu_custom_call.1} parent=1 // loop_header_branch
      %28 = sbr.rel (%p26) target = $region8
    $region5: #{tpu_custom_call.1} parent=1 // loop_body
      %s30 = ssub.s32 %s25, 1
      %s31 = ssub.s32 %s25, 2
      %s38 = sadd.s32 1, %s33
      %p39 = scmp.ge.s32.totalorder %s38, 1
      %s40 = scalar_select %p39, 0, %s38
      %s41 = sadd.s32 1, %s32
      %s42 = scalar_select %p39, %s41, %s32
      %p43 = scmp.ge.s32.totalorder %s42, 2
      %s44 = scalar_select %p43, 0, %s42
      %s45 = ssub.s32 %s33, %s40
      %p46 = scmp.eq.s32.totalorder %s45, 0
      %s48 = sadd.s32 %s47, 1
      %s49 = scalar_select %p46, %s47, %s48
      %p52 = pneg %p46
      %p53 = scmp.eq.s32.totalorder %s25, 1
      %p54 = por %p52, %p53
      %p55 = scmp.ne.s32.totalorder %s47, %s50
      %p56 = scmp.eq.s32.totalorder %s25, 0
      %p57 = por %p55, %p56
      %p58 = scmp.ne.s32.totalorder %s47, %s50
      %p59 = scmp.eq.s32.totalorder %s30, 1
      %p60 = por %p58, %p59
      %p61 = scmp.ne.s32.totalorder %s50, %s51
      %p62 = scmp.eq.s32.totalorder %s30, 0
      %p63 = por %p61, %p62
      %p64 = scmp.ne.s32.totalorder %s50, %s51
      %p65 = scmp.eq.s32.totalorder %s31, 1
      %p66 = por %p64, %p65
      %p68 = scmp.ne.s32.totalorder %s51, %s67
      %p69 = scmp.eq.s32.totalorder %s31, 0
      %p70 = por %p68, %p69
      %s71 = ssub.s32 %s32, %s44
      %s72 = ssub.s32 %s33, %s40
      %s73 = sor.u32 %s71, %s72
      %p74 = scmp.eq.s32.totalorder %s73, 0
      %s76 = sadd.s32 %s75, 1
      %s77 = scalar_select %p74, %s75, %s76
      %p80 = pneg %p74
      %p81 = scmp.eq.s32.totalorder %s25, 1
      %p82 = por %p80, %p81
      %p83 = scmp.ne.s32.totalorder %s75, %s78
      %p84 = scmp.eq.s32.totalorder %s25, 0
      %p85 = por %p83, %p84
      %p86 = scmp.ne.s32.totalorder %s75, %s78
      %p87 = scmp.eq.s32.totalorder %s30, 1
      %p88 = por %p86, %p87
      %p89 = scmp.ne.s32.totalorder %s78, %s79
      %p90 = scmp.eq.s32.totalorder %s30, 0
      %p91 = por %p89, %p90
      %p92 = scmp.ne.s32.totalorder %s78, %s79
      %p93 = scmp.eq.s32.totalorder %s31, 1
      %p94 = por %p92, %p93
      %p96 = scmp.ne.s32.totalorder %s79, %s95
      %p97 = scmp.eq.s32.totalorder %s31, 0
      %p98 = por %p96, %p97
      %s99 = ssub.s32 %s32, %s44
      %s100 = ssub.s32 %s33, %s40
      %s101 = sor.u32 %s99, %s100
      %p102 = scmp.eq.s32.totalorder %s101, 0
      %s104 = sadd.s32 %s103, 1
      %s105 = scalar_select %p102, %s103, %s104
      %p108 = pneg %p102
      %p109 = scmp.eq.s32.totalorder %s25, 1
      %p110 = por %p108, %p109
      %p111 = scmp.ne.s32.totalorder %s103, %s106
      %p112 = scmp.eq.s32.totalorder %s25, 0
      %p113 = por %p111, %p112
      %p114 = scmp.ne.s32.totalorder %s103, %s106
      %p115 = scmp.eq.s32.totalorder %s30, 1
      %p116 = por %p114, %p115
      %p117 = scmp.ne.s32.totalorder %s106, %s107
      %p118 = scmp.eq.s32.totalorder %s30, 0
      %p119 = por %p117, %p118
      %p120 = scmp.ne.s32.totalorder %s106, %s107
      %p121 = scmp.eq.s32.totalorder %s31, 1
      %p122 = por %p120, %p121
      %p124 = scmp.ne.s32.totalorder %s107, %s123
      %p125 = scmp.eq.s32.totalorder %s31, 0
      %p126 = por %p124, %p125
      %s127 = ssub.s32 %s32, %s44
      %p128 = scmp.eq.s32.totalorder %s127, 0
      %s130 = sadd.s32 %s129, 1
      %s131 = scalar_select %p128, %s129, %s130
      %p134 = pneg %p128
      %p135 = scmp.eq.s32.totalorder %s25, 1
      %p136 = por %p134, %p135
      %p137 = scmp.ne.s32.totalorder %s129, %s132
      %p138 = scmp.eq.s32.totalorder %s25, 0
      %p139 = por %p137, %p138
      %p140 = scmp.ne.s32.totalorder %s129, %s132
      %p141 = scmp.eq.s32.totalorder %s30, 1
      %p142 = por %p140, %p141
      %p143 = scmp.ne.s32.totalorder %s132, %s133
      %p144 = scmp.eq.s32.totalorder %s30, 0
      %p145 = por %p143, %p144
      %p146 = scmp.ne.s32.totalorder %s132, %s133
      %p147 = scmp.eq.s32.totalorder %s31, 1
      %p148 = por %p146, %p147
      %p150 = scmp.ne.s32.totalorder %s133, %s149
      %p151 = scmp.eq.s32.totalorder %s31, 0
      %p152 = por %p150, %p151
      %s154 = sadd.s32 %s153, 1
      %p157 = scmp.eq.s32.totalorder %s25, 1
      %p158 = scmp.ne.s32.totalorder %s153, %s155
      %p159 = scmp.eq.s32.totalorder %s25, 0
      %p160 = por %p158, %p159
      %p161 = scmp.ne.s32.totalorder %s153, %s155
      %p162 = scmp.eq.s32.totalorder %s30, 1
      %p163 = por %p161, %p162
      %p164 = scmp.ne.s32.totalorder %s155, %s156
      %p165 = scmp.eq.s32.totalorder %s30, 0
      %p166 = por %p164, %p165
      %p167 = scmp.ne.s32.totalorder %s155, %s156
      %p168 = scmp.eq.s32.totalorder %s31, 1
      %p169 = por %p167, %p168
      %p171 = scmp.ne.s32.totalorder %s156, %s170
      %p172 = scmp.eq.s32.totalorder %s31, 0
      %p173 = por %p171, %p172
      %s175 = sadd.s32 %s174, 1
      %p178 = scmp.eq.s32.totalorder %s25, 1
      %p179 = scmp.ne.s32.totalorder %s174, %s176
      %p180 = scmp.eq.s32.totalorder %s25, 0
      %p181 = por %p179, %p180
      %p182 = scmp.ne.s32.totalorder %s174, %s176
      %p183 = scmp.eq.s32.totalorder %s30, 1
      %p184 = por %p182, %p183
      %p185 = scmp.ne.s32.totalorder %s176, %s177
      %p186 = scmp.eq.s32.totalorder %s30, 0
      %p187 = por %p185, %p186
      %p188 = scmp.ne.s32.totalorder %s176, %s177
      %p189 = scmp.eq.s32.totalorder %s31, 1
      %p190 = por %p188, %p189
      %p192 = scmp.ne.s32.totalorder %s177, %s191
      %p193 = scmp.eq.s32.totalorder %s31, 0
      %p194 = por %p192, %p193
      %s196 = sadd.s32 %s195, 1
      %p199 = scmp.eq.s32.totalorder %s25, 1
      %p200 = scmp.ne.s32.totalorder %s195, %s197
      %p201 = scmp.eq.s32.totalorder %s25, 0
      %p202 = por %p200, %p201
      %p203 = scmp.ne.s32.totalorder %s195, %s197
      %p204 = scmp.eq.s32.totalorder %s30, 1
      %p205 = por %p203, %p204
      %p206 = scmp.ne.s32.totalorder %s197, %s198
      %p207 = scmp.eq.s32.totalorder %s30, 0
      %p208 = por %p206, %p207
      %p209 = scmp.ne.s32.totalorder %s197, %s198
      %p210 = scmp.eq.s32.totalorder %s31, 1
      %p211 = por %p209, %p210
      %p213 = scmp.ne.s32.totalorder %s198, %s212
      %p214 = scmp.eq.s32.totalorder %s31, 0
      %p215 = por %p213, %p214
      %s217 = sadd.s32 %s216, 1
      %p220 = scmp.eq.s32.totalorder %s25, 1
      %p221 = scmp.ne.s32.totalorder %s216, %s218
      %p222 = scmp.eq.s32.totalorder %s25, 0
      %p223 = por %p221, %p222
      %p224 = scmp.ne.s32.totalorder %s216, %s218
      %p225 = scmp.eq.s32.totalorder %s30, 1
      %p226 = por %p224, %p225
      %p227 = scmp.ne.s32.totalorder %s218, %s219
      %p228 = scmp.eq.s32.totalorder %s30, 0
      %p229 = por %p227, %p228
      %p230 = scmp.ne.s32.totalorder %s218, %s219
      %p231 = scmp.eq.s32.totalorder %s31, 1
      %p232 = por %p230, %p231
      %p234 = scmp.ne.s32.totalorder %s219, %s233
      %p235 = scmp.eq.s32.totalorder %s31, 0
      %p236 = por %p234, %p235
      %s238 = sadd.s32 %s237, 1
      %p241 = scmp.eq.s32.totalorder %s25, 1
      %p242 = scmp.ne.s32.totalorder %s237, %s239
      %p243 = scmp.eq.s32.totalorder %s25, 0
      %p244 = por %p242, %p243
      %p245 = scmp.ne.s32.totalorder %s237, %s239
      %p246 = scmp.eq.s32.totalorder %s30, 1
      %p247 = por %p245, %p246
      %p248 = scmp.ne.s32.totalorder %s239, %s240
      %p249 = scmp.eq.s32.totalorder %s30, 0
      %p250 = por %p248, %p249
      %p251 = scmp.ne.s32.totalorder %s239, %s240
      %p252 = scmp.eq.s32.totalorder %s31, 1
      %p253 = por %p251, %p252
      %p255 = scmp.ne.s32.totalorder %s240, %s254
      %p256 = scmp.eq.s32.totalorder %s31, 0
      %p257 = por %p255, %p256
      %s259 = sadd.s32 %s258, 1
      %p262 = scmp.eq.s32.totalorder %s25, 1
      %p263 = scmp.ne.s32.totalorder %s258, %s260
      %p264 = scmp.eq.s32.totalorder %s25, 0
      %p265 = por %p263, %p264
      %p266 = scmp.ne.s32.totalorder %s258, %s260
      %p267 = scmp.eq.s32.totalorder %s30, 1
      %p268 = por %p266, %p267
      %p269 = scmp.ne.s32.totalorder %s260, %s261
      %p270 = scmp.eq.s32.totalorder %s30, 0
      %p271 = por %p269, %p270
      %p272 = scmp.ne.s32.totalorder %s260, %s261
      %p273 = scmp.eq.s32.totalorder %s31, 1
      %p274 = por %p272, %p273
      %p276 = scmp.ne.s32.totalorder %s261, %s275
      %p277 = scmp.eq.s32.totalorder %s31, 0
      %p278 = por %p276, %p277
      %s279 = ssub.s32 %s32, %s44
      %s280 = ssub.s32 %s33, %s40
      %s281 = sor.u32 %s279, %s280
      %p282 = scmp.eq.s32.totalorder %s281, 0
      %s284 = sadd.s32 %s283, 1
      %s285 = scalar_select %p282, %s283, %s284
      %p288 = pneg %p282
      %p289 = scmp.eq.s32.totalorder %s25, 1
      %p290 = por %p288, %p289
      %p291 = scmp.ne.s32.totalorder %s283, %s286
      %p292 = scmp.eq.s32.totalorder %s25, 0
      %p293 = por %p291, %p292
      %p294 = scmp.ne.s32.totalorder %s283, %s286
      %p295 = scmp.eq.s32.totalorder %s30, 1
      %p296 = por %p294, %p295
      %p297 = scmp.ne.s32.totalorder %s286, %s287
      %p298 = scmp.eq.s32.totalorder %s30, 0
      %p299 = por %p297, %p298
      %p300 = scmp.ne.s32.totalorder %s286, %s287
      %p301 = scmp.eq.s32.totalorder %s31, 1
      %p302 = por %p300, %p301
      %p304 = scmp.ne.s32.totalorder %s287, %s303
      %p305 = scmp.eq.s32.totalorder %s31, 0
      %p306 = por %p304, %p305
      %s307 = ssub.s32 %s32, %s44
      %s308 = ssub.s32 %s33, %s40
      %s309 = sor.u32 %s307, %s308
      %p310 = scmp.eq.s32.totalorder %s309, 0
      %s312 = sadd.s32 %s311, 1
      %s313 = scalar_select %p310, %s311, %s312
      %p316 = pneg %p310
      %p317 = scmp.eq.s32.totalorder %s25, 1
      %p318 = por %p316, %p317
      %p319 = scmp.ne.s32.totalorder %s311, %s314
      %p320 = scmp.eq.s32.totalorder %s25, 0
      %p321 = por %p319, %p320
      %p322 = scmp.ne.s32.totalorder %s311, %s314
      %p323 = scmp.eq.s32.totalorder %s30, 1
      %p324 = por %p322, %p323
      %p325 = scmp.ne.s32.totalorder %s314, %s315
      %p326 = scmp.eq.s32.totalorder %s30, 0
      %p327 = por %p325, %p326
      %p328 = scmp.ne.s32.totalorder %s314, %s315
      %p329 = scmp.eq.s32.totalorder %s31, 1
      %p330 = por %p328, %p329
      %p332 = scmp.ne.s32.totalorder %s315, %s331
      %p333 = scmp.eq.s32.totalorder %s31, 0
      %p334 = por %p332, %p333
      %s335 = ssub.s32 %s32, %s44
      %s336 = ssub.s32 %s33, %s40
      %s337 = sor.u32 %s335, %s336
      %p338 = scmp.eq.s32.totalorder %s337, 0
      %s340 = sadd.s32 %s339, 1
      %s341 = scalar_select %p338, %s339, %s340
      %p344 = pneg %p338
      %p345 = scmp.eq.s32.totalorder %s25, 1
      %p346 = por %p344, %p345
      %p347 = scmp.ne.s32.totalorder %s339, %s342
      %p348 = scmp.eq.s32.totalorder %s25, 0
      %p349 = por %p347, %p348
      %p350 = scmp.ne.s32.totalorder %s339, %s342
      %p351 = scmp.eq.s32.totalorder %s30, 1
      %p352 = por %p350, %p351
      %p353 = scmp.ne.s32.totalorder %s342, %s343
      %p354 = scmp.eq.s32.totalorder %s30, 0
      %p355 = por %p353, %p354
      %p356 = scmp.ne.s32.totalorder %s342, %s343
      %p357 = scmp.eq.s32.totalorder %s31, 1
      %p358 = por %p356, %p357
      %p360 = scmp.ne.s32.totalorder %s343, %s359
      %p361 = scmp.eq.s32.totalorder %s31, 0
      %p362 = por %p360, %p361
      %p363 = scmp.le.s32.totalorder 1, %s25
      %p364 = scmp.lt.s32.totalorder %s25, 3
      %p365 = pnand %p363, %p364
      %p366 = pneg %p365
      // Predicated region
      $region9: #{tpu_custom_call.1} parent=5 // pred_check
        _
      $region10: #{tpu_custom_call.1} parent=5 // pred_check_branch
        %368 = sbr.rel (%p365) target = $region12
      $region11: #{tpu_custom_call.1} parent=5 // pred_region
        %s369 = ssub.s32 %s25, 1
        // Predicated region
        $region13: #{tpu_custom_call.1} parent=11 // pred_check
          %p370 = pneg %p63
        $region14: #{tpu_custom_call.1} parent=11 // pred_check_branch
          %372 = sbr.rel (%p370) target = $region16
        $region15: #{tpu_custom_call.1} parent=11 // pred_region
          %s373 = smul.u32 8, %s35
          %p374 = scmp.lt.s32.totalorder %s373, 7
          %s375 = scalar_select %p374, %s373, 7
          %s376 = smul.addr %s375, 8
          %s377 = scalar_lea.vmem %s0, %s376
          %s378 = smul.u32 8, %s35
        $region16: #{tpu_custom_call.1} parent=11 // pred_fallthru
          _
        // Predicated region
        $region17: #{tpu_custom_call.1} parent=11 // pred_check
          %p379 = pneg %p166
        $region18: #{tpu_custom_call.1} parent=11 // pred_check_branch
          %381 = sbr.rel (%p379) target = $region20
        $region19: #{tpu_custom_call.1} parent=11 // pred_region
          _
        $region20: #{tpu_custom_call.1} parent=11 // pred_fallthru
          _
        // Predicated region
        $region21: #{tpu_custom_call.1} parent=11 // pred_check
          %p382 = pneg %p187
        $region22: #{tpu_custom_call.1} parent=11 // pred_check_branch
          %384 = sbr.rel (%p382) target = $region24
        $region23: #{tpu_custom_call.1} parent=11 // pred_region
          _
        $region24: #{tpu_custom_call.1} parent=11 // pred_fallthru
          _
        // Predicated region
        $region25: #{tpu_custom_call.1} parent=11 // pred_check
          %p385 = pneg %p208
        $region26: #{tpu_custom_call.1} parent=11 // pred_check_branch
          %387 = sbr.rel (%p385) target = $region28
        $region27: #{tpu_custom_call.1} parent=11 // pred_region
          _
        $region28: #{tpu_custom_call.1} parent=11 // pred_fallthru
          _
        // Predicated region
        $region29: #{tpu_custom_call.1} parent=11 // pred_check
          %p388 = pneg %p229
        $region30: #{tpu_custom_call.1} parent=11 // pred_check_branch
          %390 = sbr.rel (%p388) target = $region32
        $region31: #{tpu_custom_call.1} parent=11 // pred_region
          _
        $region32: #{tpu_custom_call.1} parent=11 // pred_fallthru
          _
        // Predicated region
        $region33: #{tpu_custom_call.1} parent=11 // pred_check
          %p391 = pneg %p250
        $region34: #{tpu_custom_call.1} parent=11 // pred_check_branch
          %393 = sbr.rel (%p391) target = $region36
        $region35: #{tpu_custom_call.1} parent=11 // pred_region
          _
        $region36: #{tpu_custom_call.1} parent=11 // pred_fallthru
          _
        // Predicated region
        $region37: #{tpu_custom_call.1} parent=11 // pred_check
          %p394 = pneg %p271
        $region38: #{tpu_custom_call.1} parent=11 // pred_check_branch
          %396 = sbr.rel (%p394) target = $region40
        $region39: #{tpu_custom_call.1} parent=11 // pred_region
          _
        $region40: #{tpu_custom_call.1} parent=11 // pred_fallthru
          _
      $region12: #{tpu_custom_call.1} parent=5 // pred_fallthru
        _
      %p397 = scmp.lt.s32.totalorder %s25, 2
      // Predicated region
      $region41: #{tpu_custom_call.1} parent=5 // pred_check
        %p398 = pneg %p397
      $region42: #{tpu_custom_call.1} parent=5 // pred_check_branch
        %400 = sbr.rel (%p398) target = $region44
      $region43: #{tpu_custom_call.1} parent=5 // pred_region
        // Predicated region
        $region45: #{tpu_custom_call.1} parent=43 // pred_check
          %p401 = pneg %p85
        $region46: #{tpu_custom_call.1} parent=43 // pred_check_branch
          %403 = sbr.rel (%p401) target = $region48
        $region47: #{tpu_custom_call.1} parent=43 // pred_region
          %s404 = smul.u32 8, %s33
          %p405 = scmp.lt.s32.totalorder %s32, 1
          %s406 = scalar_select %p405, %s32, 1
          %p407 = scmp.lt.s32.totalorder %s404, 7
          %s408 = scalar_select %p407, %s404, 7
          %s409 = smul.addr %s406, 8
          %s410 = sadd.s32 %s408, %s409
          %s411 = smul.addr %s410, 8
          %s412 = scalar_lea.vmem %s1, %s411
          %s413 = smul.u32 8, %s33
        $region48: #{tpu_custom_call.1} parent=43 // pred_fallthru
          _
        // Predicated region
        $region49: #{tpu_custom_call.1} parent=43 // pred_check
          %p414 = pneg %p113
        $region50: #{tpu_custom_call.1} parent=43 // pred_check_branch
          %416 = sbr.rel (%p414) target = $region52
        $region51: #{tpu_custom_call.1} parent=43 // pred_region
          %s417 = smul.u32 8, %s33
          %p418 = scmp.lt.s32.totalorder %s32, 1
          %s419 = scalar_select %p418, %s32, 1
          %p420 = scmp.lt.s32.totalorder %s417, 7
          %s421 = scalar_select %p420, %s417, 7
          %s422 = smul.addr %s419, 8
          %s423 = sadd.s32 %s421, %s422
          %s424 = smul.addr %s423, 8
          %s425 = scalar_lea.vmem %s2, %s424
          %s426 = smul.u32 8, %s33
        $region52: #{tpu_custom_call.1} parent=43 // pred_fallthru
          _
        // Predicated region
        $region53: #{tpu_custom_call.1} parent=43 // pred_check
          %p427 = pneg %p139
        $region54: #{tpu_custom_call.1} parent=43 // pred_check_branch
          %429 = sbr.rel (%p427) target = $region56
        $region55: #{tpu_custom_call.1} parent=43 // pred_region
          %p430 = scmp.lt.s32.totalorder %s32, 1
          %s431 = scalar_select %p430, %s32, 1
          %s432 = smul.addr %s431, 5
          %s433 = smul.addr %s432, 8
          %s434 = scalar_lea.vmem %s3, %s433
        $region56: #{tpu_custom_call.1} parent=43 // pred_fallthru
          _
      $region44: #{tpu_custom_call.1} parent=5 // pred_fallthru
        _
      %p435 = scmp.le.s32.totalorder 1, %s25
      %p436 = scmp.lt.s32.totalorder %s25, 3
      %p437 = pnand %p435, %p436
      %p438 = pneg %p437
      // Predicated region
      $region57: #{tpu_custom_call.1} parent=5 // pred_check
        _
      $region58: #{tpu_custom_call.1} parent=5 // pred_check_branch
        %440 = sbr.rel (%p437) target = $region60
      $region59: #{tpu_custom_call.1} parent=5 // pred_region
        %s441 = ssub.s32 %s25, 1
        %s442 = smul.u32 8, %s35
        %p443 = scmp.lt.s32.totalorder %s442, 7
        %s444 = scalar_select %p443, %s442, 7
        %s445 = smul.addr %s444, 8
        %s446 = scalar_lea.vmem %s0, %s445
        %p447 = pneg %p63
        %p448 = pneg %p60
        %s449 = smul.u32 8, %s35
        %p450 = scmp.lt.s32.totalorder %s34, 1
        %s451 = scalar_select %p450, %s34, 1
        %p452 = scmp.lt.s32.totalorder %s449, 7
        %s453 = scalar_select %p452, %s449, 7
        %s454 = smul.addr %s451, 8
        %s455 = sadd.s32 %s453, %s454
        %s456 = smul.addr %s455, 8
        %s457 = scalar_lea.vmem %s1, %s456
        %p458 = pneg %p91
        %p459 = pneg %p88
        %s460 = smul.u32 8, %s35
        %p461 = scmp.lt.s32.totalorder %s34, 1
        %s462 = scalar_select %p461, %s34, 1
        %p463 = scmp.lt.s32.totalorder %s460, 7
        %s464 = scalar_select %p463, %s460, 7
        %s465 = smul.addr %s462, 8
        %s466 = sadd.s32 %s464, %s465
        %s467 = smul.addr %s466, 8
        %s468 = scalar_lea.vmem %s2, %s467
        %p469 = pneg %p119
        %p470 = pneg %p116
        %p471 = scmp.lt.s32.totalorder %s34, 1
        %s472 = scalar_select %p471, %s34, 1
        %s473 = smul.addr %s472, 5
        %s474 = smul.addr %s473, 8
        %s475 = scalar_lea.vmem %s3, %s474
        %p476 = pneg %p145
        %p477 = pneg %p142
        %p478 = pneg %p166
        %p479 = pneg %p163
        %p480 = pneg %p187
        %p481 = pneg %p184
        %p482 = pneg %p208
        %p483 = pneg %p205
        %p484 = pneg %p229
        %p485 = pneg %p226
        %p486 = pneg %p250
        %p487 = pneg %p247
        %p488 = pneg %p271
        %p489 = pneg %p268
        %p490 = pneg %p299
        %p491 = pneg %p296
        %s492 = sand.u32 %s286, 1
        %s493 = scalar_lea.sflag [#allocation3], %s492
        %s494 = sand.u32 %s286, 1
        %s495 = smul.addr %s494, 8
        %s496 = scalar_lea.vmem [#allocation2], %s495
        %p497 = pneg %p327
        %p498 = pneg %p324
        %s499 = sand.u32 %s314, 1
        %s500 = scalar_lea.sflag [#allocation5], %s499
        %s501 = sand.u32 %s314, 1
        %s502 = smul.addr %s501, 64
        %s503 = scalar_lea.vmem [#allocation4], %s502
        %p504 = pneg %p355
        %p505 = pneg %p352
        %s506 = smul.u32 8, %s35
        %p507 = scmp.lt.s32.totalorder %s34, 1
        %s508 = scalar_select %p507, %s34, 1
        %p509 = scmp.lt.s32.totalorder %s506, 7
        %s510 = scalar_select %p509, %s506, 7
        %s511 = smul.addr %s510, 2
        %s512 = smul.addr %s508, 16
        %s513 = sadd.s32 %s511, %s512
        %s514 = smul.addr %s513, 8
        %s515 = scalar_lea.vmem %s12, %s514
        %s516 = smul.u32 8, %s35
        %p517 = scmp.lt.s32.totalorder %s516, 7
        %s518 = scalar_select %p517, %s516, 7
        %s519 = smul.addr %s518, 8
        %s520 = scalar_lea.vmem %s0, %s519
        %s521 = smul.u32 8, %s35
        %s522 = smul.u32 8, %s35
        %p523 = scmp.lt.s32.totalorder %s34, 1
        %s524 = scalar_select %p523, %s34, 1
        %p525 = scmp.lt.s32.totalorder %s522, 7
        %s526 = scalar_select %p525, %s522, 7
        %s527 = smul.addr %s524, 8
        %s528 = sadd.s32 %s526, %s527
        %s529 = smul.addr %s528, 8
        %s530 = scalar_lea.vmem %s1, %s529
        %s531 = smul.u32 8, %s35
        %s532 = smul.u32 8, %s35
        %p533 = scmp.lt.s32.totalorder %s34, 1
        %s534 = scalar_select %p533, %s34, 1
        %p535 = scmp.lt.s32.totalorder %s532, 7
        %s536 = scalar_select %p535, %s532, 7
        %s537 = smul.addr %s534, 8
        %s538 = sadd.s32 %s536, %s537
        %s539 = smul.addr %s538, 8
        %s540 = scalar_lea.vmem %s2, %s539
        %s541 = smul.u32 8, %s35
        %p542 = scmp.lt.s32.totalorder %s34, 1
        %s543 = scalar_select %p542, %s34, 1
        %s544 = smul.addr %s543, 5
        %s545 = smul.addr %s544, 8
        %s546 = scalar_lea.vmem %s3, %s545
        %s547 = smul.u32 8, %s35
        %s548 = smul.u32 8, %s35
        %p549 = scmp.lt.s32.totalorder %s34, 1
        %s550 = scalar_select %p549, %s34, 1
        %p551 = scmp.lt.s32.totalorder %s548, 7
        %s552 = scalar_select %p551, %s548, 7
        %s553 = smul.addr %s552, 2
        %s554 = smul.addr %s550, 16
        %s555 = sadd.s32 %s553, %s554
        %s556 = smul.addr %s555, 8
        %s557 = scalar_lea.vmem %s12, %s556
        %s558 = smul.u32 8, %s35
        %s559 = smul.u32 %s35, 8
        %v560 = vld [vmem:[%s520] sm:$0xff]
        %v561 = vld [vmem:[%s520 + $0x8] sm:$0xff]
        %v562 = vld [vmem:[%s520 + $0x10] sm:$0xff]
        %v563 = vld [vmem:[%s520 + $0x18] sm:$0xff]
        %v564 = vld [vmem:[%s520 + $0x20] sm:$0xff]
        %v565 = vld [vmem:[%s520 + $0x28] sm:$0xff]
        %v566 = vld [vmem:[%s520 + $0x30] sm:$0xff]
        %v567 = vld [vmem:[%s520 + $0x38] sm:$0xff]
        %s568 = scalar_lea.vmem %s520, 64
        %v569 = vld [vmem:[%s568] sm:$0xff]
        %v570 = vld [vmem:[%s568 + $0x8] sm:$0xff]
        %v571 = vld [vmem:[%s568 + $0x10] sm:$0xff]
        %v572 = vld [vmem:[%s568 + $0x18] sm:$0xff]
        %v573 = vld [vmem:[%s568 + $0x20] sm:$0xff]
        %v574 = vld [vmem:[%s568 + $0x28] sm:$0xff]
        %v575 = vld [vmem:[%s568 + $0x30] sm:$0xff]
        %v576 = vld [vmem:[%s568 + $0x38] sm:$0xff]
        %s577 = scalar_lea.vmem %s520, 128
        %v578 = vld [vmem:[%s577] sm:$0xff]
        %v579 = vld [vmem:[%s577 + $0x8] sm:$0xff]
        %v580 = vld [vmem:[%s577 + $0x10] sm:$0xff]
        %v581 = vld [vmem:[%s577 + $0x18] sm:$0xff]
        %v582 = vld [vmem:[%s577 + $0x20] sm:$0xff]
        %v583 = vld [vmem:[%s577 + $0x28] sm:$0xff]
        %v584 = vld [vmem:[%s577 + $0x30] sm:$0xff]
        %v585 = vld [vmem:[%s577 + $0x38] sm:$0xff]
        %v586 = vld [vmem:[%s530] sm:$0xff]
        %v587 = vld [vmem:[%s530 + $0x8] sm:$0xff]
        %v588 = vld [vmem:[%s530 + $0x10] sm:$0xff]
        %v589 = vld [vmem:[%s530 + $0x18] sm:$0xff]
        %v590 = vld [vmem:[%s530 + $0x20] sm:$0xff]
        %v591 = vld [vmem:[%s530 + $0x28] sm:$0xff]
        %v592 = vld [vmem:[%s530 + $0x30] sm:$0xff]
        %v593 = vld [vmem:[%s530 + $0x38] sm:$0xff]
        %v594 = vld [vmem:[%s540] sm:$0xff]
        %v595 = vld [vmem:[%s540 + $0x8] sm:$0xff]
        %v596 = vld [vmem:[%s540 + $0x10] sm:$0xff]
        %v597 = vld [vmem:[%s540 + $0x18] sm:$0xff]
        %v598 = vld [vmem:[%s540 + $0x20] sm:$0xff]
        %v599 = vld [vmem:[%s540 + $0x28] sm:$0xff]
        %v600 = vld [vmem:[%s540 + $0x30] sm:$0xff]
        %v601 = vld [vmem:[%s540 + $0x38] sm:$0xff]
        %v602 = vld [vmem:[%s546] sm:$0xff]
        %s603 = scalar_lea.vmem %s546, 8
        %v604 = vld [vmem:[%s603] sm:$0xff]
        %s605 = scalar_lea.vmem %s546, 16
        %v606 = vld [vmem:[%s605] sm:$0xff]
        %s607 = scalar_lea.vmem %s546, 24
        %v608 = vld [vmem:[%s607] sm:$0xff]
        %s609 = scalar_lea.vmem %s546, 32
        %v610 = vld [vmem:[%s609] sm:$0xff]
        %v611 = vstv %s559
        %v612 = vadd.s32 %v611, 1
        %v613 = vadd.s32 %v611, 2
        %v614 = vadd.s32 %v611, 3
        %v615 = vadd.s32 %v611, 4
        %v616 = vadd.s32 %v611, 5
        %v617 = vadd.s32 %v611, 6
        %v618 = vadd.s32 %v611, 7
        %v619 = vlaneseq
        %v620 = vand.u32 %v619, 127
        %vm621 = vcmp.ge.s32.totalorder %v611, %v620
        %vm622 = vcmp.ge.s32.totalorder %v612, %v620
        %vm623 = vcmp.ge.s32.totalorder %v613, %v620
        %vm624 = vcmp.ge.s32.totalorder %v614, %v620
        %vm625 = vcmp.ge.s32.totalorder %v615, %v620
        %vm626 = vcmp.ge.s32.totalorder %v616, %v620
        %vm627 = vcmp.ge.s32.totalorder %v617, %v620
        %vm628 = vcmp.ge.s32.totalorder %v618, %v620
        %v629 = vsub.s32 %v611, %v620
        %v630 = vsub.s32 %v612, %v620
        %v631 = vsub.s32 %v613, %v620
        %v632 = vsub.s32 %v614, %v620
        %v633 = vsub.s32 %v615, %v620
        %v634 = vsub.s32 %v616, %v620
        %v635 = vsub.s32 %v617, %v620
        %v636 = vsub.s32 %v618, %v620
        %vm637 = vcmp.gt.s32.totalorder %v629, 0
        %v638 = vsel %vm637, %v629, 0
        %vm639 = vcmp.gt.s32.totalorder %v630, 0
        %v640 = vsel %vm639, %v630, 0
        %vm641 = vcmp.gt.s32.totalorder %v631, 0
        %v642 = vsel %vm641, %v631, 0
        %vm643 = vcmp.gt.s32.totalorder %v632, 0
        %v644 = vsel %vm643, %v632, 0
        %vm645 = vcmp.gt.s32.totalorder %v633, 0
        %v646 = vsel %vm645, %v633, 0
        %vm647 = vcmp.gt.s32.totalorder %v634, 0
        %v648 = vsel %vm647, %v634, 0
        %vm649 = vcmp.gt.s32.totalorder %v635, 0
        %v650 = vsel %vm649, %v635, 0
        %vm651 = vcmp.gt.s32.totalorder %v636, 0
        %v652 = vsel %vm651, %v636, 0
        %v653 = vcvt.s32.f32 %v638
        %v654 = vcvt.s32.f32 %v640
        %v655 = vcvt.s32.f32 %v642
        %v656 = vcvt.s32.f32 %v644
        %v657 = vcvt.s32.f32 %v646
        %v658 = vcvt.s32.f32 %v648
        %v659 = vcvt.s32.f32 %v650
        %v660 = vcvt.s32.f32 %v652
        %662 = vset.pattern.permute.xlu0 0
        %663 = vperm.xlu0 %662, %v560
        %v664 = vpop.permute.xlu0 %663
        %667 = vset.pattern.permute.xlu0 0
        %668 = vperm.xlu0 %667, %v561
        %v669 = vpop.permute.xlu0 %668
        %672 = vset.pattern.permute.xlu0 0
        %673 = vperm.xlu0 %672, %v562
        %v674 = vpop.permute.xlu0 %673
        %677 = vset.pattern.permute.xlu0 0
        %678 = vperm.xlu0 %677, %v563
        %v679 = vpop.permute.xlu0 %678
        %682 = vset.pattern.permute.xlu0 0
        %683 = vperm.xlu0 %682, %v564
        %v684 = vpop.permute.xlu0 %683
        %687 = vset.pattern.permute.xlu0 0
        %688 = vperm.xlu0 %687, %v565
        %v689 = vpop.permute.xlu0 %688
        %692 = vset.pattern.permute.xlu0 0
        %693 = vperm.xlu0 %692, %v566
        %v694 = vpop.permute.xlu0 %693
        %697 = vset.pattern.permute.xlu0 0
        %698 = vperm.xlu0 %697, %v567
        %v699 = vpop.permute.xlu0 %698
        %v701 = vmul.f32 %v664, %v602
        %v702 = vmul.f32 %v669, %v602
        %v703 = vmul.f32 %v674, %v602
        %v704 = vmul.f32 %v679, %v602
        %v705 = vmul.f32 %v684, %v602
        %v706 = vmul.f32 %v689, %v602
        %v707 = vmul.f32 %v694, %v602
        %v708 = vmul.f32 %v699, %v602
        %710 = vset.pattern.permute.xlu0 0
        %711 = vperm.xlu0 %710, %v569
        %v712 = vpop.permute.xlu0 %711
        %715 = vset.pattern.permute.xlu0 0
        %716 = vperm.xlu0 %715, %v570
        %v717 = vpop.permute.xlu0 %716
        %720 = vset.pattern.permute.xlu0 0
        %721 = vperm.xlu0 %720, %v571
        %v722 = vpop.permute.xlu0 %721
        %725 = vset.pattern.permute.xlu0 0
        %726 = vperm.xlu0 %725, %v572
        %v727 = vpop.permute.xlu0 %726
        %730 = vset.pattern.permute.xlu0 0
        %731 = vperm.xlu0 %730, %v573
        %v732 = vpop.permute.xlu0 %731
        %735 = vset.pattern.permute.xlu0 0
        %736 = vperm.xlu0 %735, %v574
        %v737 = vpop.permute.xlu0 %736
        %740 = vset.pattern.permute.xlu0 0
        %741 = vperm.xlu0 %740, %v575
        %v742 = vpop.permute.xlu0 %741
        %745 = vset.pattern.permute.xlu0 0
        %746 = vperm.xlu0 %745, %v576
        %v747 = vpop.permute.xlu0 %746
        %v749 = vmul.f32 %v712, %v604
        %v750 = vmul.f32 %v717, %v604
        %v751 = vmul.f32 %v722, %v604
        %v752 = vmul.f32 %v727, %v604
        %v753 = vmul.f32 %v732, %v604
        %v754 = vmul.f32 %v737, %v604
        %v755 = vmul.f32 %v742, %v604
        %v756 = vmul.f32 %v747, %v604
        %v757 = vsub.f32 %v701, %v749
        %v758 = vsub.f32 %v702, %v750
        %v759 = vsub.f32 %v703, %v751
        %v760 = vsub.f32 %v704, %v752
        %v761 = vsub.f32 %v705, %v753
        %v762 = vsub.f32 %v706, %v754
        %v763 = vsub.f32 %v707, %v755
        %v764 = vsub.f32 %v708, %v756
        %v765 = vsel %vm621, 1, 0
        %v766 = vsel %vm622, 1, 0
        %v767 = vsel %vm623, 1, 0
        %v768 = vsel %vm624, 1, 0
        %v769 = vsel %vm625, 1, 0
        %v770 = vsel %vm626, 1, 0
        %v771 = vsel %vm627, 1, 0
        %v772 = vsel %vm628, 1, 0
        %vm773 = vcmp.eq.s32.totalorder %v765, 1
        %vm774 = vcmp.eq.s32.totalorder %v766, 1
        %vm775 = vcmp.eq.s32.totalorder %v767, 1
        %vm776 = vcmp.eq.s32.totalorder %v768, 1
        %vm777 = vcmp.eq.s32.totalorder %v769, 1
        %vm778 = vcmp.eq.s32.totalorder %v770, 1
        %vm779 = vcmp.eq.s32.totalorder %v771, 1
        %vm780 = vcmp.eq.s32.totalorder %v772, 1
        %v781 = vsel %vm773, %v757, 0.0
        %v782 = vsel %vm774, %v758, 0.0
        %v783 = vsel %vm775, %v759, 0.0
        %v784 = vsel %vm776, %v760, 0.0
        %v785 = vsel %vm777, %v761, 0.0
        %v786 = vsel %vm778, %v762, 0.0
        %v787 = vsel %vm779, %v763, 0.0
        %v788 = vsel %vm780, %v764, 0.0
        %v789 = vmul.f32 %v664, %v604
        %v790 = vmul.f32 %v669, %v604
        %v791 = vmul.f32 %v674, %v604
        %v792 = vmul.f32 %v679, %v604
        %v793 = vmul.f32 %v684, %v604
        %v794 = vmul.f32 %v689, %v604
        %v795 = vmul.f32 %v694, %v604
        %v796 = vmul.f32 %v699, %v604
        %v797 = vmul.f32 %v712, %v602
        %v798 = vmul.f32 %v717, %v602
        %v799 = vmul.f32 %v722, %v602
        %v800 = vmul.f32 %v727, %v602
        %v801 = vmul.f32 %v732, %v602
        %v802 = vmul.f32 %v737, %v602
        %v803 = vmul.f32 %v742, %v602
        %v804 = vmul.f32 %v747, %v602
        %v805 = vadd.f32 %v789, %v797
        %v806 = vadd.f32 %v790, %v798
        %v807 = vadd.f32 %v791, %v799
        %v808 = vadd.f32 %v792, %v800
        %v809 = vadd.f32 %v793, %v801
        %v810 = vadd.f32 %v794, %v802
        %v811 = vadd.f32 %v795, %v803
        %v812 = vadd.f32 %v796, %v804
        %v813 = vsel %vm773, %v805, 0.0
        %v814 = vsel %vm774, %v806, 0.0
        %v815 = vsel %vm775, %v807, 0.0
        %v816 = vsel %vm776, %v808, 0.0
        %v817 = vsel %vm777, %v809, 0.0
        %v818 = vsel %vm778, %v810, 0.0
        %v819 = vsel %vm779, %v811, 0.0
        %v820 = vsel %vm780, %v812, 0.0
        %v821 = vmul.f32 %v664, %v606
        %v822 = vmul.f32 %v669, %v606
        %v823 = vmul.f32 %v674, %v606
        %v824 = vmul.f32 %v679, %v606
        %v825 = vmul.f32 %v684, %v606
        %v826 = vmul.f32 %v689, %v606
        %v827 = vmul.f32 %v694, %v606
        %v828 = vmul.f32 %v699, %v606
        %v829 = vmul.f32 %v712, %v608
        %v830 = vmul.f32 %v717, %v608
        %v831 = vmul.f32 %v722, %v608
        %v832 = vmul.f32 %v727, %v608
        %v833 = vmul.f32 %v732, %v608
        %v834 = vmul.f32 %v737, %v608
        %v835 = vmul.f32 %v742, %v608
        %v836 = vmul.f32 %v747, %v608
        %v837 = vsub.f32 %v821, %v829
        %v838 = vsub.f32 %v822, %v830
        %v839 = vsub.f32 %v823, %v831
        %v840 = vsub.f32 %v824, %v832
        %v841 = vsub.f32 %v825, %v833
        %v842 = vsub.f32 %v826, %v834
        %v843 = vsub.f32 %v827, %v835
        %v844 = vsub.f32 %v828, %v836
        %846 = vset.pattern.permute.xlu0 0
        %847 = vperm.xlu0 %846, %v586
        %v848 = vpop.permute.xlu0 %847
        %851 = vset.pattern.permute.xlu0 0
        %852 = vperm.xlu0 %851, %v587
        %v853 = vpop.permute.xlu0 %852
        %856 = vset.pattern.permute.xlu0 0
        %857 = vperm.xlu0 %856, %v588
        %v858 = vpop.permute.xlu0 %857
        %861 = vset.pattern.permute.xlu0 0
        %862 = vperm.xlu0 %861, %v589
        %v863 = vpop.permute.xlu0 %862
        %866 = vset.pattern.permute.xlu0 0
        %867 = vperm.xlu0 %866, %v590
        %v868 = vpop.permute.xlu0 %867
        %871 = vset.pattern.permute.xlu0 0
        %872 = vperm.xlu0 %871, %v591
        %v873 = vpop.permute.xlu0 %872
        %876 = vset.pattern.permute.xlu0 0
        %877 = vperm.xlu0 %876, %v592
        %v878 = vpop.permute.xlu0 %877
        %881 = vset.pattern.permute.xlu0 0
        %882 = vperm.xlu0 %881, %v593
        %v883 = vpop.permute.xlu0 %882
        %v885 = vsub.f32 %v848, %v837
        %v886 = vsub.f32 %v853, %v838
        %v887 = vsub.f32 %v858, %v839
        %v888 = vsub.f32 %v863, %v840
        %v889 = vsub.f32 %v868, %v841
        %v890 = vsub.f32 %v873, %v842
        %v891 = vsub.f32 %v878, %v843
        %v892 = vsub.f32 %v883, %v844
        %v893 = vmul.f32 %v664, %v608
        %v894 = vmul.f32 %v669, %v608
        %v895 = vmul.f32 %v674, %v608
        %v896 = vmul.f32 %v679, %v608
        %v897 = vmul.f32 %v684, %v608
        %v898 = vmul.f32 %v689, %v608
        %v899 = vmul.f32 %v694, %v608
        %v900 = vmul.f32 %v699, %v608
        %v901 = vmul.f32 %v712, %v606
        %v902 = vmul.f32 %v717, %v606
        %v903 = vmul.f32 %v722, %v606
        %v904 = vmul.f32 %v727, %v606
        %v905 = vmul.f32 %v732, %v606
        %v906 = vmul.f32 %v737, %v606
        %v907 = vmul.f32 %v742, %v606
        %v908 = vmul.f32 %v747, %v606
        %v909 = vadd.f32 %v893, %v901
        %v910 = vadd.f32 %v894, %v902
        %v911 = vadd.f32 %v895, %v903
        %v912 = vadd.f32 %v896, %v904
        %v913 = vadd.f32 %v897, %v905
        %v914 = vadd.f32 %v898, %v906
        %v915 = vadd.f32 %v899, %v907
        %v916 = vadd.f32 %v900, %v908
        %918 = vset.pattern.permute.xlu0 0
        %919 = vperm.xlu0 %918, %v594
        %v920 = vpop.permute.xlu0 %919
        %923 = vset.pattern.permute.xlu0 0
        %924 = vperm.xlu0 %923, %v595
        %v925 = vpop.permute.xlu0 %924
        %928 = vset.pattern.permute.xlu0 0
        %929 = vperm.xlu0 %928, %v596
        %v930 = vpop.permute.xlu0 %929
        %933 = vset.pattern.permute.xlu0 0
        %934 = vperm.xlu0 %933, %v597
        %v935 = vpop.permute.xlu0 %934
        %938 = vset.pattern.permute.xlu0 0
        %939 = vperm.xlu0 %938, %v598
        %v940 = vpop.permute.xlu0 %939
        %943 = vset.pattern.permute.xlu0 0
        %944 = vperm.xlu0 %943, %v599
        %v945 = vpop.permute.xlu0 %944
        %948 = vset.pattern.permute.xlu0 0
        %949 = vperm.xlu0 %948, %v600
        %v950 = vpop.permute.xlu0 %949
        %953 = vset.pattern.permute.xlu0 0
        %954 = vperm.xlu0 %953, %v601
        %v955 = vpop.permute.xlu0 %954
        %v957 = vsub.f32 %v920, %v909
        %v958 = vsub.f32 %v925, %v910
        %v959 = vsub.f32 %v930, %v911
        %v960 = vsub.f32 %v935, %v912
        %v961 = vsub.f32 %v940, %v913
        %v962 = vsub.f32 %v945, %v914
        %v963 = vsub.f32 %v950, %v915
        %v964 = vsub.f32 %v955, %v916
        %966 = vset.pattern.permute.xlu0 0
        %967 = vperm.xlu0 %966, %v578
        %v968 = vpop.permute.xlu0 %967
        %971 = vset.pattern.permute.xlu0 0
        %972 = vperm.xlu0 %971, %v579
        %v973 = vpop.permute.xlu0 %972
        %976 = vset.pattern.permute.xlu0 0
        %977 = vperm.xlu0 %976, %v580
        %v978 = vpop.permute.xlu0 %977
        %981 = vset.pattern.permute.xlu0 0
        %982 = vperm.xlu0 %981, %v581
        %v983 = vpop.permute.xlu0 %982
        %986 = vset.pattern.permute.xlu0 0
        %987 = vperm.xlu0 %986, %v582
        %v988 = vpop.permute.xlu0 %987
        %991 = vset.pattern.permute.xlu0 0
        %992 = vperm.xlu0 %991, %v583
        %v993 = vpop.permute.xlu0 %992
        %996 = vset.pattern.permute.xlu0 0
        %997 = vperm.xlu0 %996, %v584
        %v998 = vpop.permute.xlu0 %997
        %1001 = vset.pattern.permute.xlu0 0
        %1002 = vperm.xlu0 %1001, %v585
        %v1003 = vpop.permute.xlu0 %1002
        %v1005 = vmul.f32 %v968, %v610
        %v1006 = vmul.f32 %v973, %v610
        %v1007 = vmul.f32 %v978, %v610
        %v1008 = vmul.f32 %v983, %v610
        %v1009 = vmul.f32 %v988, %v610
        %v1010 = vmul.f32 %v993, %v610
        %v1011 = vmul.f32 %v998, %v610
        %v1012 = vmul.f32 %v1003, %v610
        %v1013 = vld [vmem:[%s4] sm:$0xff]
        %s1014 = scalar_lea.vmem %s4, 8
        %v1015 = vld [vmem:[%s1014] sm:$0xff]
        %1017 = vset.pattern.permute.xlu0 0
        %1018 = vperm.xlu0 %1017, %v1015
        %v1019 = vpop.permute.xlu0 %1018
        %v1021 = vmul.f32 %v1019, %v1005
        %v1022 = vmul.f32 %v1019, %v1006
        %v1023 = vmul.f32 %v1019, %v1007
        %v1024 = vmul.f32 %v1019, %v1008
        %v1025 = vmul.f32 %v1019, %v1009
        %v1026 = vmul.f32 %v1019, %v1010
        %v1027 = vmul.f32 %v1019, %v1011
        %v1028 = vmul.f32 %v1019, %v1012
        %1030 = vset.pattern.permute.xlu0 0
        %1031 = vperm.xlu0 %1030, %v1013
        %v1032 = vpop.permute.xlu0 %1031
        %v1034 = vadd.f32 %v1032, %v1021
        %v1035 = vadd.f32 %v1032, %v1022
        %v1036 = vadd.f32 %v1032, %v1023
        %v1037 = vadd.f32 %v1032, %v1024
        %v1038 = vadd.f32 %v1032, %v1025
        %v1039 = vadd.f32 %v1032, %v1026
        %v1040 = vadd.f32 %v1032, %v1027
        %v1041 = vadd.f32 %v1032, %v1028
        %s1042 = scalar_lea.vmem %s4, 16
        %v1043 = vld [vmem:[%s1042] sm:$0xff]
        %1045 = vset.pattern.permute.xlu0 0
        %1046 = vperm.xlu0 %1045, %v1043
        %v1047 = vpop.permute.xlu0 %1046
        %v1049 = vmul.f32 %v1047, %v653
        %v1050 = vmul.f32 %v1047, %v654
        %v1051 = vmul.f32 %v1047, %v655
        %v1052 = vmul.f32 %v1047, %v656
        %v1053 = vmul.f32 %v1047, %v657
        %v1054 = vmul.f32 %v1047, %v658
        %v1055 = vmul.f32 %v1047, %v659
        %v1056 = vmul.f32 %v1047, %v660
        %v1057 = vadd.f32 %v1034, %v1049
        %v1058 = vadd.f32 %v1035, %v1050
        %v1059 = vadd.f32 %v1036, %v1051
        %v1060 = vadd.f32 %v1037, %v1052
        %v1061 = vadd.f32 %v1038, %v1053
        %v1062 = vadd.f32 %v1039, %v1054
        %v1063 = vadd.f32 %v1040, %v1055
        %v1064 = vadd.f32 %v1041, %v1056
        %v1065 = vrcp.pop %v1057
        %v1066 = vrcp.pop %v1058
        %v1067 = vrcp.pop %v1059
        %v1068 = vrcp.pop %v1060
        %v1069 = vrcp.pop %v1061
        %v1070 = vrcp.pop %v1062
        %v1071 = vrcp.pop %v1063
        %v1072 = vrcp.pop %v1064
        %v1073 = vmul.f32 %v885, %v885
        %v1074 = vmul.f32 %v886, %v886
        %v1075 = vmul.f32 %v887, %v887
        %v1076 = vmul.f32 %v888, %v888
        %v1077 = vmul.f32 %v889, %v889
        %v1078 = vmul.f32 %v890, %v890
        %v1079 = vmul.f32 %v891, %v891
        %v1080 = vmul.f32 %v892, %v892
        %v1081 = vmul.f32 %v957, %v957
        %v1082 = vmul.f32 %v958, %v958
        %v1083 = vmul.f32 %v959, %v959
        %v1084 = vmul.f32 %v960, %v960
        %v1085 = vmul.f32 %v961, %v961
        %v1086 = vmul.f32 %v962, %v962
        %v1087 = vmul.f32 %v963, %v963
        %v1088 = vmul.f32 %v964, %v964
        %v1089 = vadd.f32 %v1073, %v1081
        %v1090 = vadd.f32 %v1074, %v1082
        %v1091 = vadd.f32 %v1075, %v1083
        %v1092 = vadd.f32 %v1076, %v1084
        %v1093 = vadd.f32 %v1077, %v1085
        %v1094 = vadd.f32 %v1078, %v1086
        %v1095 = vadd.f32 %v1079, %v1087
        %v1096 = vadd.f32 %v1080, %v1088
        %v1097 = vmul.f32 %v1065, %v1089
        %v1098 = vmul.f32 %v1066, %v1090
        %v1099 = vmul.f32 %v1067, %v1091
        %v1100 = vmul.f32 %v1068, %v1092
        %v1101 = vmul.f32 %v1069, %v1093
        %v1102 = vmul.f32 %v1070, %v1094
        %v1103 = vmul.f32 %v1071, %v1095
        %v1104 = vmul.f32 %v1072, %v1096
        %vm1105 = vcmask 64512
        %v1106 = vsel %vm1105, %v1097, 0.0
        %v1107 = vrot.slane %v1106, 4
        %v1108 = vadd.f32 %v1106, %v1107
        %v1109 = vrot.slane %v1108, 2
        %v1110 = vadd.f32 %v1108, %v1109
        %v1111 = vrot.slane %v1110, 1
        %v1112 = vadd.f32 %v1110, %v1111
        %v1113 = vsel %vm1105, %v1098, 0.0
        %v1114 = vrot.slane %v1113, 4
        %v1115 = vadd.f32 %v1113, %v1114
        %v1116 = vrot.slane %v1115, 2
        %v1117 = vadd.f32 %v1115, %v1116
        %v1118 = vrot.slane %v1117, 1
        %v1119 = vadd.f32 %v1117, %v1118
        %v1120 = vsel %vm1105, %v1099, 0.0
        %v1121 = vrot.slane %v1120, 4
        %v1122 = vadd.f32 %v1120, %v1121
        %v1123 = vrot.slane %v1122, 2
        %v1124 = vadd.f32 %v1122, %v1123
        %v1125 = vrot.slane %v1124, 1
        %v1126 = vadd.f32 %v1124, %v1125
        %v1127 = vsel %vm1105, %v1100, 0.0
        %v1128 = vrot.slane %v1127, 4
        %v1129 = vadd.f32 %v1127, %v1128
        %v1130 = vrot.slane %v1129, 2
        %v1131 = vadd.f32 %v1129, %v1130
        %v1132 = vrot.slane %v1131, 1
        %v1133 = vadd.f32 %v1131, %v1132
        %v1134 = vsel %vm1105, %v1101, 0.0
        %v1135 = vrot.slane %v1134, 4
        %v1136 = vadd.f32 %v1134, %v1135
        %v1137 = vrot.slane %v1136, 2
        %v1138 = vadd.f32 %v1136, %v1137
        %v1139 = vrot.slane %v1138, 1
        %v1140 = vadd.f32 %v1138, %v1139
        %v1141 = vsel %vm1105, %v1102, 0.0
        %v1142 = vrot.slane %v1141, 4
        %v1143 = vadd.f32 %v1141, %v1142
        %v1144 = vrot.slane %v1143, 2
        %v1145 = vadd.f32 %v1143, %v1144
        %v1146 = vrot.slane %v1145, 1
        %v1147 = vadd.f32 %v1145, %v1146
        %v1148 = vsel %vm1105, %v1103, 0.0
        %v1149 = vrot.slane %v1148, 4
        %v1150 = vadd.f32 %v1148, %v1149
        %v1151 = vrot.slane %v1150, 2
        %v1152 = vadd.f32 %v1150, %v1151
        %v1153 = vrot.slane %v1152, 1
        %v1154 = vadd.f32 %v1152, %v1153
        %v1155 = vsel %vm1105, %v1104, 0.0
        %v1156 = vrot.slane %v1155, 4
        %v1157 = vadd.f32 %v1155, %v1156
        %v1158 = vrot.slane %v1157, 2
        %v1159 = vadd.f32 %v1157, %v1158
        %v1160 = vrot.slane %v1159, 1
        %v1161 = vadd.f32 %v1159, %v1160
        %v1162 = vadd.f32 %v1112, 1.0
        %v1163 = vadd.f32 %v1119, 1.0
        %v1164 = vadd.f32 %v1126, 1.0
        %v1165 = vadd.f32 %v1133, 1.0
        %v1166 = vadd.f32 %v1140, 1.0
        %v1167 = vadd.f32 %v1147, 1.0
        %v1168 = vadd.f32 %v1154, 1.0
        %v1169 = vadd.f32 %v1161, 1.0
        %v1170 = vrcp.pop %v1162
        %v1171 = vmul.f32 1.0, %v1170
        %v1172 = vrcp.pop %v1163
        %v1173 = vmul.f32 1.0, %v1172
        %v1174 = vrcp.pop %v1164
        %v1175 = vmul.f32 1.0, %v1174
        %v1176 = vrcp.pop %v1165
        %v1177 = vmul.f32 1.0, %v1176
        %v1178 = vrcp.pop %v1166
        %v1179 = vmul.f32 1.0, %v1178
        %v1180 = vrcp.pop %v1167
        %v1181 = vmul.f32 1.0, %v1180
        %v1182 = vrcp.pop %v1168
        %v1183 = vmul.f32 1.0, %v1182
        %v1184 = vrcp.pop %v1169
        %v1185 = vmul.f32 1.0, %v1184
        %v1186 = vmul.f32 %v1065, %v1171
        %v1187 = vmul.f32 %v1066, %v1173
        %v1188 = vmul.f32 %v1067, %v1175
        %v1189 = vmul.f32 %v1068, %v1177
        %v1190 = vmul.f32 %v1069, %v1179
        %v1191 = vmul.f32 %v1070, %v1181
        %v1192 = vmul.f32 %v1071, %v1183
        %v1193 = vmul.f32 %v1072, %v1185
        %v1194 = vsel %vm773, %v1186, 0.0
        %v1195 = vsel %vm774, %v1187, 0.0
        %v1196 = vsel %vm775, %v1188, 0.0
        %v1197 = vsel %vm776, %v1189, 0.0
        %v1198 = vsel %vm777, %v1190, 0.0
        %v1199 = vsel %vm778, %v1191, 0.0
        %v1200 = vsel %vm779, %v1192, 0.0
        %v1201 = vsel %vm780, %v1193, 0.0
        %v1202 = vsel %vm1105, %v1194, 0.0
        %1203 = vadd.xlane.f32.xlu0 %v1202
        %v1204 = vpop.xlane.xlu0 %1203
        %v1205 = vsel %vm1105, %v1195, 0.0
        %1206 = vadd.xlane.f32.xlu0 %v1205
        %v1207 = vpop.xlane.xlu0 %1206
        %v1208 = vsel %vm1105, %v1196, 0.0
        %1209 = vadd.xlane.f32.xlu0 %v1208
        %v1210 = vpop.xlane.xlu0 %1209
        %v1211 = vsel %vm1105, %v1197, 0.0
        %1212 = vadd.xlane.f32.xlu0 %v1211
        %v1213 = vpop.xlane.xlu0 %1212
        %v1214 = vsel %vm1105, %v1198, 0.0
        %1215 = vadd.xlane.f32.xlu0 %v1214
        %v1216 = vpop.xlane.xlu0 %1215
        %v1217 = vsel %vm1105, %v1199, 0.0
        %1218 = vadd.xlane.f32.xlu0 %v1217
        %v1219 = vpop.xlane.xlu0 %1218
        %v1220 = vsel %vm1105, %v1200, 0.0
        %1221 = vadd.xlane.f32.xlu0 %v1220
        %v1222 = vpop.xlane.xlu0 %1221
        %v1223 = vsel %vm1105, %v1201, 0.0
        %1224 = vadd.xlane.f32.xlu0 %v1223
        %v1225 = vpop.xlane.xlu0 %1224
        %v1226 = vrcp.pop %v1204
        %v1227 = vmul.f32 1.0, %v1226
        %v1228 = vrcp.pop %v1207
        %v1229 = vmul.f32 1.0, %v1228
        %v1230 = vrcp.pop %v1210
        %v1231 = vmul.f32 1.0, %v1230
        %v1232 = vrcp.pop %v1213
        %v1233 = vmul.f32 1.0, %v1232
        %v1234 = vrcp.pop %v1216
        %v1235 = vmul.f32 1.0, %v1234
        %v1236 = vrcp.pop %v1219
        %v1237 = vmul.f32 1.0, %v1236
        %v1238 = vrcp.pop %v1222
        %v1239 = vmul.f32 1.0, %v1238
        %v1240 = vrcp.pop %v1225
        %v1241 = vmul.f32 1.0, %v1240
        %v1242 = vmul.f32 %v1194, %v1227
        %v1243 = vmul.f32 %v1195, %v1229
        %v1244 = vmul.f32 %v1196, %v1231
        %v1245 = vmul.f32 %v1197, %v1233
        %v1246 = vmul.f32 %v1198, %v1235
        %v1247 = vmul.f32 %v1199, %v1237
        %v1248 = vmul.f32 %v1200, %v1239
        %v1249 = vmul.f32 %v1201, %v1241
        %v1250 = vmul.f32 %v1242, %v781
        %v1251 = vmul.f32 %v1243, %v782
        %v1252 = vmul.f32 %v1244, %v783
        %v1253 = vmul.f32 %v1245, %v784
        %v1254 = vmul.f32 %v1246, %v785
        %v1255 = vmul.f32 %v1247, %v786
        %v1256 = vmul.f32 %v1248, %v787
        %v1257 = vmul.f32 %v1249, %v788
        %v1258 = vsel %vm1105, %v1250, 0.0
        %1259 = vadd.xlane.f32.xlu0 %v1258
        %v1260 = vpop.xlane.xlu0 %1259
        %v1261 = vsel %vm1105, %v1251, 0.0
        %1262 = vadd.xlane.f32.xlu0 %v1261
        %v1263 = vpop.xlane.xlu0 %1262
        %v1264 = vsel %vm1105, %v1252, 0.0
        %1265 = vadd.xlane.f32.xlu0 %v1264
        %v1266 = vpop.xlane.xlu0 %1265
        %v1267 = vsel %vm1105, %v1253, 0.0
        %1268 = vadd.xlane.f32.xlu0 %v1267
        %v1269 = vpop.xlane.xlu0 %1268
        %v1270 = vsel %vm1105, %v1254, 0.0
        %1271 = vadd.xlane.f32.xlu0 %v1270
        %v1272 = vpop.xlane.xlu0 %1271
        %v1273 = vsel %vm1105, %v1255, 0.0
        %1274 = vadd.xlane.f32.xlu0 %v1273
        %v1275 = vpop.xlane.xlu0 %1274
        %v1276 = vsel %vm1105, %v1256, 0.0
        %1277 = vadd.xlane.f32.xlu0 %v1276
        %v1278 = vpop.xlane.xlu0 %1277
        %v1279 = vsel %vm1105, %v1257, 0.0
        %1280 = vadd.xlane.f32.xlu0 %v1279
        %v1281 = vpop.xlane.xlu0 %1280
        %v1282 = vmul.f32 %v1242, %v813
        %v1283 = vmul.f32 %v1243, %v814
        %v1284 = vmul.f32 %v1244, %v815
        %v1285 = vmul.f32 %v1245, %v816
        %v1286 = vmul.f32 %v1246, %v817
        %v1287 = vmul.f32 %v1247, %v818
        %v1288 = vmul.f32 %v1248, %v819
        %v1289 = vmul.f32 %v1249, %v820
        %v1290 = vsel %vm1105, %v1282, 0.0
        %1291 = vadd.xlane.f32.xlu0 %v1290
        %v1292 = vpop.xlane.xlu0 %1291
        %v1293 = vsel %vm1105, %v1283, 0.0
        %1294 = vadd.xlane.f32.xlu0 %v1293
        %v1295 = vpop.xlane.xlu0 %1294
        %v1296 = vsel %vm1105, %v1284, 0.0
        %1297 = vadd.xlane.f32.xlu0 %v1296
        %v1298 = vpop.xlane.xlu0 %1297
        %v1299 = vsel %vm1105, %v1285, 0.0
        %1300 = vadd.xlane.f32.xlu0 %v1299
        %v1301 = vpop.xlane.xlu0 %1300
        %v1302 = vsel %vm1105, %v1286, 0.0
        %1303 = vadd.xlane.f32.xlu0 %v1302
        %v1304 = vpop.xlane.xlu0 %1303
        %v1305 = vsel %vm1105, %v1287, 0.0
        %1306 = vadd.xlane.f32.xlu0 %v1305
        %v1307 = vpop.xlane.xlu0 %1306
        %v1308 = vsel %vm1105, %v1288, 0.0
        %1309 = vadd.xlane.f32.xlu0 %v1308
        %v1310 = vpop.xlane.xlu0 %1309
        %v1311 = vsel %vm1105, %v1289, 0.0
        %1312 = vadd.xlane.f32.xlu0 %v1311
        %v1313 = vpop.xlane.xlu0 %1312
        %v1322 = vlaneseq
        %v1323 = vshrl.u32 %v1322, 7
        %v1324 = vsub.s32 %v620, %v1323
        %v1325 = vrot.slane %v1260, %v1324
        %v1326 = vlaneseq
        %v1327 = vshrl.u32 %v1326, 7
        %v1328 = vsub.s32 %v620, %v1327
        %v1329 = vrot.slane %v1263, %v1328
        %v1330 = vlaneseq
        %v1331 = vshrl.u32 %v1330, 7
        %v1332 = vsub.s32 %v620, %v1331
        %v1333 = vrot.slane %v1266, %v1332
        %v1334 = vlaneseq
        %v1335 = vshrl.u32 %v1334, 7
        %v1336 = vsub.s32 %v620, %v1335
        %v1337 = vrot.slane %v1269, %v1336
        %v1338 = vlaneseq
        %v1339 = vshrl.u32 %v1338, 7
        %v1340 = vsub.s32 %v620, %v1339
        %v1341 = vrot.slane %v1272, %v1340
        %v1342 = vlaneseq
        %v1343 = vshrl.u32 %v1342, 7
        %v1344 = vsub.s32 %v620, %v1343
        %v1345 = vrot.slane %v1275, %v1344
        %v1346 = vlaneseq
        %v1347 = vshrl.u32 %v1346, 7
        %v1348 = vsub.s32 %v620, %v1347
        %v1349 = vrot.slane %v1278, %v1348
        %v1350 = vlaneseq
        %v1351 = vshrl.u32 %v1350, 7
        %v1352 = vsub.s32 %v620, %v1351
        %v1353 = vrot.slane %v1281, %v1352
        %vm1354 = vcmask 1041409
        %v1355 = vsel %vm1354, %v1329, %v1325
        %vm1356 = vcmask 1042434
        %v1357 = vsel %vm1356, %v1333, %v1355
        %vm1358 = vcmask 1043459
        %v1359 = vsel %vm1358, %v1337, %v1357
        %vm1360 = vcmask 1044484
        %v1361 = vsel %vm1360, %v1341, %v1359
        %vm1362 = vcmask 1045509
        %v1363 = vsel %vm1362, %v1345, %v1361
        %vm1364 = vcmask 1046534
        %v1365 = vsel %vm1364, %v1349, %v1363
        %vm1366 = vcmask 1047559
        %v1367 = vsel %vm1366, %v1353, %v1365
        %v1377 = vadd.s32 %v620, 4294967288
        %v1378 = vlaneseq
        %v1379 = vshrl.u32 %v1378, 7
        %v1380 = vsub.s32 %v1377, %v1379
        %v1381 = vrot.slane %v1292, %v1380
        %v1382 = vlaneseq
        %v1383 = vshrl.u32 %v1382, 7
        %v1384 = vsub.s32 %v1377, %v1383
        %v1385 = vrot.slane %v1295, %v1384
        %v1386 = vlaneseq
        %v1387 = vshrl.u32 %v1386, 7
        %v1388 = vsub.s32 %v1377, %v1387
        %v1389 = vrot.slane %v1298, %v1388
        %v1390 = vlaneseq
        %v1391 = vshrl.u32 %v1390, 7
        %v1392 = vsub.s32 %v1377, %v1391
        %v1393 = vrot.slane %v1301, %v1392
        %v1394 = vlaneseq
        %v1395 = vshrl.u32 %v1394, 7
        %v1396 = vsub.s32 %v1377, %v1395
        %v1397 = vrot.slane %v1304, %v1396
        %v1398 = vlaneseq
        %v1399 = vshrl.u32 %v1398, 7
        %v1400 = vsub.s32 %v1377, %v1399
        %v1401 = vrot.slane %v1307, %v1400
        %v1402 = vlaneseq
        %v1403 = vshrl.u32 %v1402, 7
        %v1404 = vsub.s32 %v1377, %v1403
        %v1405 = vrot.slane %v1310, %v1404
        %v1406 = vlaneseq
        %v1407 = vshrl.u32 %v1406, 7
        %v1408 = vsub.s32 %v1377, %v1407
        %v1409 = vrot.slane %v1313, %v1408
        %v1410 = vsel %vm1354, %v1385, %v1381
        %v1411 = vsel %vm1356, %v1389, %v1410
        %v1412 = vsel %vm1358, %v1393, %v1411
        %v1413 = vsel %vm1360, %v1397, %v1412
        %v1414 = vsel %vm1362, %v1401, %v1413
        %v1415 = vsel %vm1364, %v1405, %v1414
        %v1416 = vsel %vm1366, %v1409, %v1415
        %v1418 = vsel %vm1105, %v1367, %v1416
        %v1419 = vld [vmem:[%s6] sm:$0xff]
        %v1420 = vld [vmem:[%s6 + $0x8] sm:$0xff]
        %v1421 = vld [vmem:[%s7] sm:$0x1]
        %v1423 = vlaneseq
        %v1424 = vshrl.u32 %v1423, 7
        %v1425 = vsub.s32 0, %v1424
        %v1426 = vrot.slane %v1421, %v1425
        %vm1428 = vcmask 130048
        %v1430 = vsel %vm1428, %v1418, 0
        %1432 = vmatprep.subr.mxu0 0.0
        %1433 = vmatpush1.msra.mxu0 %v1419
        %1434 = vmatprep.subr.mxu0 0.0
        %1435 = vmatpush1.msra.mxu0 %v1420
        %1436 = vmatprep.subr.mxu0 0.0
        %1437 = vmatpush1.msra.mxu0 0.0
        %1438 = vmatprep.subr.mxu0 0.0
        %1439 = vmatpush1.msra.mxu0 0.0
        %1440 = vmatprep.subr.mxu0 0.0
        %1441 = vmatpush1.msra.mxu0 0.0
        %1442 = vmatprep.subr.mxu0 0.0
        %1443 = vmatpush1.msra.mxu0 0.0
        %1444 = vmatprep.subr.mxu0 0.0
        %1445 = vmatpush1.msra.mxu0 0.0
        %1446 = vmatprep.subr.mxu0 0.0
        %1447 = vmatpush1.msra.mxu0 0.0
        %1448 = vmatprep.subr.mxu0 0.0
        %1449 = vmatpush1.msra.mxu0 0.0
        %1450 = vmatprep.subr.mxu0 0.0
        %1451 = vmatpush1.msra.mxu0 0.0
        %1452 = vmatprep.subr.mxu0 0.0
        %1453 = vmatpush1.msra.mxu0 0.0
        %1454 = vmatprep.subr.mxu0 0.0
        %1455 = vmatpush1.msra.mxu0 0.0
        %1456 = vmatprep.subr.mxu0 0.0
        %1457 = vmatpush1.msra.mxu0 0.0
        %1458 = vmatprep.subr.mxu0 0.0
        %1459 = vmatpush1.msra.mxu0 0.0
        %1460 = vmatprep.subr.mxu0 0.0
        %1461 = vmatpush1.msra.mxu0 0.0
        %1462 = vmatprep.subr.mxu0 0.0
        %1463 = vmatpush1.msra.mxu0 0.0
        %1464 = vmatprep.subr.mxu0 0.0
        %1465 = vmatpush1.msra.mxu0 0.0
        %1466 = vmatprep.subr.mxu0 0.0
        %1467 = vmatpush1.msra.mxu0 0.0
        %1468 = vmatprep.subr.mxu0 0.0
        %1469 = vmatpush1.msra.mxu0 0.0
        %1470 = vmatprep.subr.mxu0 0.0
        %1471 = vmatpush1.msra.mxu0 0.0
        %1472 = vmatprep.subr.mxu0 0.0
        %1473 = vmatpush1.msra.mxu0 0.0
        %1474 = vmatprep.subr.mxu0 0.0
        %1475 = vmatpush1.msra.mxu0 0.0
        %1476 = vmatprep.subr.mxu0 0.0
        %1477 = vmatpush1.msra.mxu0 0.0
        %1478 = vmatprep.subr.mxu0 0.0
        %1479 = vmatpush1.msra.mxu0 0.0
        %1480 = vmatprep.subr.mxu0 0.0
        %1481 = vmatpush1.msra.mxu0 0.0
        %1482 = vmatprep.subr.mxu0 0.0
        %1483 = vmatpush1.msra.mxu0 0.0
        %1484 = vmatprep.subr.mxu0 0.0
        %1485 = vmatpush1.msra.mxu0 0.0
        %1486 = vmatprep.subr.mxu0 0.0
        %1487 = vmatpush1.msra.mxu0 0.0
        %1488 = vmatprep.subr.mxu0 0.0
        %1489 = vmatpush1.msra.mxu0 0.0
        %1490 = vmatprep.subr.mxu0 0.0
        %1491 = vmatpush1.msra.mxu0 0.0
        %1492 = vmatprep.subr.mxu0 0.0
        %1493 = vmatpush1.msra.mxu0 0.0
        %1494 = vmatprep.subr.mxu0 0.0
        %1495 = vmatpush1.msra.mxu0 0.0
        %1496 = vmatprep.mubr.f32.mxu0 0.0
        %1497 = vmatmul.mubr.f32.gmra.mrb[0].mxu0 %v1430
        %v1498 = vpop.f32.mrb[0].mxu0
        %v1499 = vadd.f32 %v1426, %v1498
        %v1500 = vpop.f32.mrb[0].mxu0
        %1501 = vdwg.mxu0
        %v1502 = vld [vmem:[%s5] sm:$0x1]
        %s1503 = scalar_lea.vmem %s5, 1
        %v1504 = vld [vmem:[%s1503] sm:$0x1]
        %v1506 = vlaneseq
        %v1507 = vshrl.u32 %v1506, 7
        %v1508 = vsub.s32 0, %v1507
        %v1509 = vrot.slane %v1502, %v1508
        %v1511 = vmul.f32 %v1509, %v1367
        %v1513 = vlaneseq
        %v1514 = vshrl.u32 %v1513, 7
        %v1515 = vsub.s32 0, %v1514
        %v1516 = vrot.slane %v1504, %v1515
        %v1518 = vlaneseq
        %v1519 = vshrl.u32 %v1518, 7
        %v1520 = vsub.s32 %v620, %v1519
        %v1521 = vrot.slane %v1292, %v1520
        %v1522 = vlaneseq
        %v1523 = vshrl.u32 %v1522, 7
        %v1524 = vsub.s32 %v620, %v1523
        %v1525 = vrot.slane %v1295, %v1524
        %v1526 = vlaneseq
        %v1527 = vshrl.u32 %v1526, 7
        %v1528 = vsub.s32 %v620, %v1527
        %v1529 = vrot.slane %v1298, %v1528
        %v1530 = vlaneseq
        %v1531 = vshrl.u32 %v1530, 7
        %v1532 = vsub.s32 %v620, %v1531
        %v1533 = vrot.slane %v1301, %v1532
        %v1534 = vlaneseq
        %v1535 = vshrl.u32 %v1534, 7
        %v1536 = vsub.s32 %v620, %v1535
        %v1537 = vrot.slane %v1304, %v1536
        %v1538 = vlaneseq
        %v1539 = vshrl.u32 %v1538, 7
        %v1540 = vsub.s32 %v620, %v1539
        %v1541 = vrot.slane %v1307, %v1540
        %v1542 = vlaneseq
        %v1543 = vshrl.u32 %v1542, 7
        %v1544 = vsub.s32 %v620, %v1543
        %v1545 = vrot.slane %v1310, %v1544
        %v1546 = vlaneseq
        %v1547 = vshrl.u32 %v1546, 7
        %v1548 = vsub.s32 %v620, %v1547
        %v1549 = vrot.slane %v1313, %v1548
        %v1550 = vsel %vm1354, %v1525, %v1521
        %v1551 = vsel %vm1356, %v1529, %v1550
        %v1552 = vsel %vm1358, %v1533, %v1551
        %v1553 = vsel %vm1360, %v1537, %v1552
        %v1554 = vsel %vm1362, %v1541, %v1553
        %v1555 = vsel %vm1364, %v1545, %v1554
        %v1556 = vsel %vm1366, %v1549, %v1555
        %v1558 = vmul.f32 %v1516, %v1556
        %v1559 = vsub.f32 %v1511, %v1558
        %v1560 = vmul.f32 %v1509, %v1556
        %v1561 = vmul.f32 %v1516, %v1367
        %v1562 = vadd.f32 %v1560, %v1561
        %1564 = vrot.lane.b32.xlu0 %v1562, 8
        %v1565 = vpop.permute.xlu0 %1564
        %v1567 = vsel %vm1105, %v1559, %v1565
        %v1568 = vld [vmem:[%s8] sm:$0xff]
        %v1569 = vld [vmem:[%s8 + $0x8] sm:$0xff]
        %v1570 = vld [vmem:[%s9] sm:$0x1]
        %v1572 = vlaneseq
        %v1573 = vshrl.u32 %v1572, 7
        %v1574 = vsub.s32 0, %v1573
        %v1575 = vrot.slane %v1570, %v1574
        %v1578 = vsel %vm1428, %v1567, 0
        %1580 = vmatprep.subr.mxu0 0.0
        %1581 = vmatpush1.msra.mxu0 %v1568
        %1582 = vmatprep.subr.mxu0 0.0
        %1583 = vmatpush1.msra.mxu0 %v1569
        %1584 = vmatprep.subr.mxu0 0.0
        %1585 = vmatpush1.msra.mxu0 0.0
        %1586 = vmatprep.subr.mxu0 0.0
        %1587 = vmatpush1.msra.mxu0 0.0
        %1588 = vmatprep.subr.mxu0 0.0
        %1589 = vmatpush1.msra.mxu0 0.0
        %1590 = vmatprep.subr.mxu0 0.0
        %1591 = vmatpush1.msra.mxu0 0.0
        %1592 = vmatprep.subr.mxu0 0.0
        %1593 = vmatpush1.msra.mxu0 0.0
        %1594 = vmatprep.subr.mxu0 0.0
        %1595 = vmatpush1.msra.mxu0 0.0
        %1596 = vmatprep.subr.mxu0 0.0
        %1597 = vmatpush1.msra.mxu0 0.0
        %1598 = vmatprep.subr.mxu0 0.0
        %1599 = vmatpush1.msra.mxu0 0.0
        %1600 = vmatprep.subr.mxu0 0.0
        %1601 = vmatpush1.msra.mxu0 0.0
        %1602 = vmatprep.subr.mxu0 0.0
        %1603 = vmatpush1.msra.mxu0 0.0
        %1604 = vmatprep.subr.mxu0 0.0
        %1605 = vmatpush1.msra.mxu0 0.0
        %1606 = vmatprep.subr.mxu0 0.0
        %1607 = vmatpush1.msra.mxu0 0.0
        %1608 = vmatprep.subr.mxu0 0.0
        %1609 = vmatpush1.msra.mxu0 0.0
        %1610 = vmatprep.subr.mxu0 0.0
        %1611 = vmatpush1.msra.mxu0 0.0
        %1612 = vmatprep.subr.mxu0 0.0
        %1613 = vmatpush1.msra.mxu0 0.0
        %1614 = vmatprep.subr.mxu0 0.0
        %1615 = vmatpush1.msra.mxu0 0.0
        %1616 = vmatprep.subr.mxu0 0.0
        %1617 = vmatpush1.msra.mxu0 0.0
        %1618 = vmatprep.subr.mxu0 0.0
        %1619 = vmatpush1.msra.mxu0 0.0
        %1620 = vmatprep.subr.mxu0 0.0
        %1621 = vmatpush1.msra.mxu0 0.0
        %1622 = vmatprep.subr.mxu0 0.0
        %1623 = vmatpush1.msra.mxu0 0.0
        %1624 = vmatprep.subr.mxu0 0.0
        %1625 = vmatpush1.msra.mxu0 0.0
        %1626 = vmatprep.subr.mxu0 0.0
        %1627 = vmatpush1.msra.mxu0 0.0
        %1628 = vmatprep.subr.mxu0 0.0
        %1629 = vmatpush1.msra.mxu0 0.0
        %1630 = vmatprep.subr.mxu0 0.0
        %1631 = vmatpush1.msra.mxu0 0.0
        %1632 = vmatprep.subr.mxu0 0.0
        %1633 = vmatpush1.msra.mxu0 0.0
        %1634 = vmatprep.subr.mxu0 0.0
        %1635 = vmatpush1.msra.mxu0 0.0
        %1636 = vmatprep.subr.mxu0 0.0
        %1637 = vmatpush1.msra.mxu0 0.0
        %1638 = vmatprep.subr.mxu0 0.0
        %1639 = vmatpush1.msra.mxu0 0.0
        %1640 = vmatprep.subr.mxu0 0.0
        %1641 = vmatpush1.msra.mxu0 0.0
        %1642 = vmatprep.subr.mxu0 0.0
        %1643 = vmatpush1.msra.mxu0 0.0
        %1644 = vmatprep.mubr.f32.mxu0 0.0
        %1645 = vmatmul.mubr.f32.gmra.mrb[0].mxu0 %v1578
        %v1646 = vpop.f32.mrb[0].mxu0
        %v1647 = vadd.f32 %v1575, %v1646
        %v1648 = vpop.f32.mrb[0].mxu0
        %1649 = vdwg.mxu0
        %v1650 = vmul.f32 %v1647, 0.5
        %v1651 = vadd.f32 %v1650, %v1499
        %1653 = vrot.lane.b32.xlu0 %v1651, 16
        %v1654 = vpop.permute.xlu0 %1653
        %v1656 = vsel %vm1428, %v1499, %v1654
        %vm1657 = vcmask 261120
        %1658 = vst.msk [vmem:[%s496] sm:$0xff] %vm1657, %v1656
        %1659 = vst.msk [vmem:[%s503] sm:$0xff] %vm1105, %v1242
        %1660 = vst.msk [vmem:[%s503 + $0x8] sm:$0xff] %vm1105, %v1243
        %1661 = vst.msk [vmem:[%s503 + $0x10] sm:$0xff] %vm1105, %v1244
        %1662 = vst.msk [vmem:[%s503 + $0x18] sm:$0xff] %vm1105, %v1245
        %1663 = vst.msk [vmem:[%s503 + $0x20] sm:$0xff] %vm1105, %v1246
        %1664 = vst.msk [vmem:[%s503 + $0x28] sm:$0xff] %vm1105, %v1247
        %1665 = vst.msk [vmem:[%s503 + $0x30] sm:$0xff] %vm1105, %v1248
        %1666 = vst.msk [vmem:[%s503 + $0x38] sm:$0xff] %vm1105, %v1249
        %1667 = vst.msk [vmem:[%s557] sm:$0xff] %vm1105, %v781
        %1668 = vst.msk [vmem:[%s557 + $0x8] sm:$0xff] %vm1105, %v813
        %1669 = vst.msk [vmem:[%s557 + $0x10] sm:$0xff] %vm1105, %v782
        %1670 = vst.msk [vmem:[%s557 + $0x18] sm:$0xff] %vm1105, %v814
        %1671 = vst.msk [vmem:[%s557 + $0x20] sm:$0xff] %vm1105, %v783
        %1672 = vst.msk [vmem:[%s557 + $0x28] sm:$0xff] %vm1105, %v815
        %1673 = vst.msk [vmem:[%s557 + $0x30] sm:$0xff] %vm1105, %v784
        %1674 = vst.msk [vmem:[%s557 + $0x38] sm:$0xff] %vm1105, %v816
        %1675 = vst.msk [vmem:[%s557 + $0x40] sm:$0xff] %vm1105, %v785
        %1676 = vst.msk [vmem:[%s557 + $0x48] sm:$0xff] %vm1105, %v817
        %1677 = vst.msk [vmem:[%s557 + $0x50] sm:$0xff] %vm1105, %v786
        %1678 = vst.msk [vmem:[%s557 + $0x58] sm:$0xff] %vm1105, %v818
        %1679 = vst.msk [vmem:[%s557 + $0x60] sm:$0xff] %vm1105, %v787
        %1680 = vst.msk [vmem:[%s557 + $0x68] sm:$0xff] %vm1105, %v819
        %1681 = vst.msk [vmem:[%s557 + $0x70] sm:$0xff] %vm1105, %v788
        %1682 = vst.msk [vmem:[%s557 + $0x78] sm:$0xff] %vm1105, %v820
        %s1683 = sand.u32 %s286, 1
        %s1684 = scalar_lea.sflag [#allocation3], %s1683
        %s1685 = sand.u32 %s286, 1
        %s1686 = smul.addr %s1685, 8
        %s1687 = scalar_lea.vmem [#allocation2], %s1686
        %s1688 = sand.u32 %s314, 1
        %s1689 = scalar_lea.sflag [#allocation5], %s1688
        %s1690 = sand.u32 %s314, 1
        %s1691 = smul.addr %s1690, 64
        %s1692 = scalar_lea.vmem [#allocation4], %s1691
        %s1693 = smul.u32 8, %s35
        %p1694 = scmp.lt.s32.totalorder %s34, 1
        %s1695 = scalar_select %p1694, %s34, 1
        %p1696 = scmp.lt.s32.totalorder %s1693, 7
        %s1697 = scalar_select %p1696, %s1693, 7
        %s1698 = smul.addr %s1697, 2
        %s1699 = smul.addr %s1695, 16
        %s1700 = sadd.s32 %s1698, %s1699
        %s1701 = smul.addr %s1700, 8
        %s1702 = scalar_lea.vmem %s12, %s1701
        // Predicated region
        $region61: #{tpu_custom_call.1} parent=59 // pred_check
          %p1703 = pneg %p296
        $region62: #{tpu_custom_call.1} parent=59 // pred_check_branch
          %1705 = sbr.rel (%p1703) target = $region64
        $region63: #{tpu_custom_call.1} parent=59 // pred_region
          %s1707 = ssub.s32 128, 128
          %1708 = vsyncadd %s1684, %s1707
          %s1709 = sadd.s32 %s35, %s34
          %s1710 = smul.addr %s1709, 128
          %s1711 = scalar_lea.hbm %s10, %s1710
          %s1713 = sshll.u32 %s1687, 4
          %s1714 = int_to_ptr.vmem [resolvable:$true] %s1713
          %1716 = dma.vmem_to_hbm [thread:$0]  %s1714, 128, %s1711, %s1684
        $region64: #{tpu_custom_call.1} parent=59 // pred_fallthru
          _
        // Predicated region
        $region65: #{tpu_custom_call.1} parent=59 // pred_check
          %p1717 = pneg %p324
        $region66: #{tpu_custom_call.1} parent=59 // pred_check_branch
          %1719 = sbr.rel (%p1717) target = $region68
        $region67: #{tpu_custom_call.1} parent=59 // pred_region
          %s1720 = smul.u32 8, %s35
          %s1722 = ssub.s32 1024, 1024
          %1723 = vsyncadd %s1689, %s1722
          %s1724 = smul.addr %s34, 8
          %s1725 = sadd.s32 %s1720, %s1724
          %s1726 = smul.addr %s1725, 128
          %s1727 = scalar_lea.hbm %s11, %s1726
          %s1728 = sshll.u32 %s1692, 4
          %s1729 = int_to_ptr.vmem [resolvable:$true] %s1728
          %1734 = dma.vmem_to_hbm [thread:$0]  %s1729, 1024, %s1727, %s1689, 128, 128, 8
        $region68: #{tpu_custom_call.1} parent=59 // pred_fallthru
          _
        // Predicated region
        $region69: #{tpu_custom_call.1} parent=59 // pred_check
          %p1735 = pneg %p352
        $region70: #{tpu_custom_call.1} parent=59 // pred_check_branch
          %1737 = sbr.rel (%p1735) target = $region72
        $region71: #{tpu_custom_call.1} parent=59 // pred_region
          %s1738 = smul.u32 8, %s35
        $region72: #{tpu_custom_call.1} parent=59 // pred_fallthru
          _
      $region60: #{tpu_custom_call.1} parent=5 // pred_fallthru
        _
      %p1739 = scmp.le.s32.totalorder 2, %s25
      // Predicated region
      $region73: #{tpu_custom_call.1} parent=5 // pred_check
        %p1740 = pneg %p1739
      $region74: #{tpu_custom_call.1} parent=5 // pred_check_branch
        %1742 = sbr.rel (%p1740) target = $region76
      $region75: #{tpu_custom_call.1} parent=5 // pred_region
        %s1743 = ssub.s32 %s25, 2
        // Predicated region
        $region77: #{tpu_custom_call.1} parent=75 // pred_check
          %p1744 = pneg %p302
        $region78: #{tpu_custom_call.1} parent=75 // pred_check_branch
          %1746 = sbr.rel (%p1744) target = $region80
        $region79: #{tpu_custom_call.1} parent=75 // pred_region
          %s1747 = sand.u32 %s287, 1
          %s1748 = scalar_lea.sflag [#allocation3], %s1747
          %s1749 = sand.u32 %s287, 1
          %s1750 = smul.addr %s1749, 8
          %s1751 = scalar_lea.vmem [#allocation2], %s1750
          %1752 = dma.done %s1748, 128
        $region80: #{tpu_custom_call.1} parent=75 // pred_fallthru
          _
        // Predicated region
        $region81: #{tpu_custom_call.1} parent=75 // pred_check
          %p1753 = pneg %p330
        $region82: #{tpu_custom_call.1} parent=75 // pred_check_branch
          %1755 = sbr.rel (%p1753) target = $region84
        $region83: #{tpu_custom_call.1} parent=75 // pred_region
          %s1756 = sand.u32 %s315, 1
          %s1757 = scalar_lea.sflag [#allocation5], %s1756
          %s1758 = sand.u32 %s315, 1
          %s1759 = smul.addr %s1758, 64
          %s1760 = scalar_lea.vmem [#allocation4], %s1759
          %1761 = dma.done %s1757, 1024
        $region84: #{tpu_custom_call.1} parent=75 // pred_fallthru
          _
        // Predicated region
        $region85: #{tpu_custom_call.1} parent=75 // pred_check
          %p1762 = pneg %p358
        $region86: #{tpu_custom_call.1} parent=75 // pred_check_branch
          %1764 = sbr.rel (%p1762) target = $region88
        $region87: #{tpu_custom_call.1} parent=75 // pred_region
          %s1765 = smul.u32 8, %s37
          %p1766 = scmp.lt.s32.totalorder %s36, 1
          %s1767 = scalar_select %p1766, %s36, 1
          %p1768 = scmp.lt.s32.totalorder %s1765, 7
          %s1769 = scalar_select %p1768, %s1765, 7
          %s1770 = smul.addr %s1769, 2
          %s1771 = smul.addr %s1767, 16
          %s1772 = sadd.s32 %s1770, %s1771
          %s1773 = smul.addr %s1772, 8
          %s1774 = scalar_lea.vmem %s12, %s1773
        $region88: #{tpu_custom_call.1} parent=75 // pred_fallthru
          _
      $region76: #{tpu_custom_call.1} parent=5 // pred_fallthru
        _
    $region6: #{tpu_custom_call.1} parent=1 // loop_footer
      %s29 = sadd.s32 1, %s25
    $region7: #{tpu_custom_call.1} parent=1 // loop_footer_branch
      %24 = sbr.rel target = $region3
    $region8: #{tpu_custom_call.1} parent=1 // loop_exit
      _
    %1775 = vsyncpa [#allocation3], 1
    %s1776 = scalar_lea.sflag [#allocation3], 1
    %1777 = vsyncpa %s1776, 1
    %1778 = vsyncpa [#allocation5], 1
    %s1779 = scalar_lea.sflag [#allocation5], 1
    %1780 = vsyncpa %s1779, 1

</llo_original>
